<compile_context>
chip_gen: v6e
topology: v6e:2x2x1
jax: 0.10.0
libtpu: 0.0.40
codegen_flags: <defaults>
</compile_context>

<pallas_src>
import functools
import math

import jax
import jax.numpy as jnp
from jax import lax
from jax.experimental import pallas as pl
from jax.experimental.pallas import tpu as pltpu


_VMEM_LIMIT = 32 * 1024 * 1024            # safe scoped-VMEM cap on v5e/v6e/v7x
_CONTRACT_LAST = (((1,), (1,)), ((), ()))  # contract lhs dim 1 with rhs dim 1


# ----------------------------------------------------------------------------
# Fused kernel: one (batch, head) grid step.
# ----------------------------------------------------------------------------
def _fused_mha_ln_kernel(q_ref, k_ref, v_ref,
                         wq_ref, wk_ref, wv_ref,
                         bq_ref, bk_ref, bv_ref,
                         wo_ref, bo_ref, g_ref, b_ref,
                         *rest, heads, scale, eps, need_weights):
    if need_weights:
        o_ref, w_ref, acc_ref, wacc_ref = rest
    else:
        o_ref, acc_ref = rest
        w_ref = wacc_ref = None

    h = pl.program_id(1)

    @pl.when(h == 0)
    def _init():
        acc_ref[...] = jnp.zeros_like(acc_ref)
        if need_weights:
            wacc_ref[...] = jnp.zeros_like(wacc_ref)

    qf = q_ref[...]                                  # (L, E) f32 — also the residual
    qb = qf.astype(jnp.bfloat16)
    kb = k_ref[...].astype(jnp.bfloat16)
    vb = v_ref[...].astype(jnp.bfloat16)

    # Per-head input projections: the head split happens through the (Dh, E)
    # weight blocks chosen by the BlockSpec index map, not by lane slicing.
    qh = (lax.dot_general(qb, wq_ref[...], _CONTRACT_LAST,
                          preferred_element_type=jnp.float32)
          + bq_ref[...]) * scale                                             # (L, Dh)
    kh = lax.dot_general(kb, wk_ref[...], _CONTRACT_LAST,
                         preferred_element_type=jnp.float32) + bk_ref[...]   # (S, Dh)
    vh = lax.dot_general(vb, wv_ref[...], _CONTRACT_LAST,
                         preferred_element_type=jnp.float32) + bv_ref[...]   # (S, Dh)

    # Scaled dot-product attention; softmax in f32 with exact normalization.
    s = lax.dot_general(qh.astype(jnp.bfloat16), kh.astype(jnp.bfloat16),
                        _CONTRACT_LAST, preferred_element_type=jnp.float32)  # (L, S)
    s = s - jnp.max(s, axis=-1, keepdims=True)
    p = jnp.exp(s)
    p = p / jnp.sum(p, axis=-1, keepdims=True)

    if need_weights:
        wacc_ref[...] += p                           # head-sum of probabilities

    oh = jnp.dot(p.astype(jnp.bfloat16), vh.astype(jnp.bfloat16),
                 preferred_element_type=jnp.float32)                         # (L, Dh)

    # Accumulate this head's out_proj contribution directly (no concat):
    #   acc += o_h @ Wo[:, h*Dh:(h+1)*Dh]^T
    acc_ref[...] += lax.dot_general(oh.astype(jnp.bfloat16), wo_ref[...],
                                    _CONTRACT_LAST,
                                    preferred_element_type=jnp.float32)      # (L, E)

    @pl.when(h == heads - 1)
    def _epilogue():
        y = acc_ref[...] + bo_ref[...] + qf          # out_proj bias + residual (f32)
        mu = jnp.mean(y, axis=-1, keepdims=True)
        var = jnp.mean((y - mu) ** 2, axis=-1, keepdims=True)
        o_ref[...] = ((y - mu) * lax.rsqrt(var + eps)) * g_ref[...] + b_ref[...]
        if need_weights:
            w_ref[...] = wacc_ref[...] * (1.0 / heads)


def fused_mha_layernorm(q_bm, k_bm, v_bm, wq_h, wk_h, wv_h, bq_h, bk_h, bv_h,
                        wo_h, bo, gamma, beta, *, heads, scale, eps, need_weights):
    # q_bm: (N, L, E), k_bm/v_bm: (N, S, E); weights pre-split per head.
    N, L, E = q_bm.shape
    S = k_bm.shape[1]
    Dh = E // heads

    kern = functools.partial(_fused_mha_ln_kernel, heads=heads, scale=scale,
                             eps=eps, need_weights=need_weights)

    batch_idx = lambda n, h: (n, 0, 0)
    head_idx = lambda n, h: (h, 0, 0)
    const_idx = lambda n, h: (0, 0)

    in_specs = [
        pl.BlockSpec((None, L, E), batch_idx),     # q   (per batch, all heads)
        pl.BlockSpec((None, S, E), batch_idx),     # k
        pl.BlockSpec((None, S, E), batch_idx),     # v
        pl.BlockSpec((None, Dh, E), head_idx),     # Wq[h]
        pl.BlockSpec((None, Dh, E), head_idx),     # Wk[h]
        pl.BlockSpec((None, Dh, E), head_idx),     # Wv[h]
        pl.BlockSpec((None, 1, Dh), head_idx),     # bq[h]
        pl.BlockSpec((None, 1, Dh), head_idx),     # bk[h]
        pl.BlockSpec((None, 1, Dh), head_idx),     # bv[h]
        pl.BlockSpec((None, E, Dh), head_idx),     # Wo[:, h*Dh:(h+1)*Dh] slab
        pl.BlockSpec((1, E), const_idx),           # out_proj bias
        pl.BlockSpec((1, E), const_idx),           # LN gamma
        pl.BlockSpec((1, E), const_idx),           # LN beta
    ]

    if need_weights:
        out_shape = (jax.ShapeDtypeStruct((N, L, E), jnp.float32),
                     jax.ShapeDtypeStruct((N, L, S), jnp.float32))
        out_specs = (pl.BlockSpec((None, L, E), batch_idx),
                     pl.BlockSpec((None, L, S), batch_idx))
        scratch = [pltpu.VMEM((L, E), jnp.float32),
                   pltpu.VMEM((L, S), jnp.float32)]
    else:
        out_shape = jax.ShapeDtypeStruct((N, L, E), jnp.float32)
        out_specs = pl.BlockSpec((None, L, E), batch_idx)
        scratch = [pltpu.VMEM((L, E), jnp.float32)]

    result = pl.pallas_call(
        kern,
        out_shape=out_shape,
        grid=(N, heads),
        in_specs=in_specs,
        out_specs=out_specs,
        scratch_shapes=scratch,
        compiler_params=pltpu.CompilerParams(
            dimension_semantics=("parallel", "arbitrary"),
            vmem_limit_bytes=_VMEM_LIMIT),
    )(q_bm, k_bm, v_bm, wq_h, wk_h, wv_h, bq_h, bk_h, bv_h, wo_h, bo, gamma, beta)

    if need_weights:
        out_bm, weights = result
        return out_bm, weights
    return result, None


# ----------------------------------------------------------------------------
# Module-equivalent wrapper
# ----------------------------------------------------------------------------
def init_params(key, embed_size):
    k1, k2 = jax.random.split(key, 2)
    scale = 1.0 / math.sqrt(embed_size)
    return {
        "in_proj_weight": jax.random.normal(k1, (3 * embed_size, embed_size), jnp.float32) * scale,
        "in_proj_bias": jnp.zeros((3 * embed_size,), jnp.float32),
        "out_proj_weight": jax.random.normal(k2, (embed_size, embed_size), jnp.float32) * scale,
        "out_proj_bias": jnp.zeros((embed_size,), jnp.float32),
        "ln_gamma": jnp.ones((embed_size,), jnp.float32),
        "ln_beta": jnp.zeros((embed_size,), jnp.float32),
    }


def self_attention_forward(value, key, query, params, heads, need_weights=True):
    # value/key: (S, N, E), query: (L, N, E)
    L, N, E = query.shape
    S = key.shape[0]
    assert E % heads == 0, "embed_size must be divisible by heads"
    Dh = E // heads
    scale = 1.0 / math.sqrt(Dh)

    W = params["in_proj_weight"]
    b = params["in_proj_bias"]
    # Per-head bf16 weight slabs (single wrapper-side cast; halves weight DMA).
    wq_h = W[0:E].reshape(heads, Dh, E).astype(jnp.bfloat16)
    wk_h = W[E:2 * E].reshape(heads, Dh, E).astype(jnp.bfloat16)
    wv_h = W[2 * E:3 * E].reshape(heads, Dh, E).astype(jnp.bfloat16)
    bq_h = b[0:E].reshape(heads, 1, Dh)
    bk_h = b[E:2 * E].reshape(heads, 1, Dh)
    bv_h = b[2 * E:3 * E].reshape(heads, 1, Dh)
    # Wo laid out head-major so the kernel contracts the stored orientation:
    # wo_h[h, e, d] == Wo[e, h*Dh + d]   -> shape (H, E, Dh)
    wo_h = (params["out_proj_weight"].reshape(E, heads, Dh)
            .transpose(1, 0, 2).astype(jnp.bfloat16))
    bo = params["out_proj_bias"].reshape(1, E)
    gamma = params["ln_gamma"].reshape(1, E)
    beta = params["ln_beta"].reshape(1, E)

    # Single batch-major relayout per activation (fused XLA copy).  Direct
    # (L, None, E) BlockSpec indexing would give 128-byte DMA rows at E=32.
    q_bm = jnp.transpose(query, (1, 0, 2))   # (N, L, E)
    k_bm = jnp.transpose(key, (1, 0, 2))     # (N, S, E)
    v_bm = jnp.transpose(value, (1, 0, 2))   # (N, S, E)

    out_bm, weights = fused_mha_layernorm(
        q_bm, k_bm, v_bm, wq_h, wk_h, wv_h, bq_h, bk_h, bv_h,
        wo_h, bo, gamma, beta,
        heads=heads, scale=scale, eps=1e-5, need_weights=need_weights)

    out = jnp.transpose(out_bm, (1, 0, 2))   # back to (L, N, E)
    return out, weights


if __name__ == "__main__":
    embed_size = 32
    heads = 4
    L = S = 8   # target / source sequence length
    N = 2       # batch

    root = jax.random.PRNGKey(0)
    kq, kk, kv, kp = jax.random.split(root, 4)
    query = jax.random.normal(kq, (L, N, embed_size), jnp.float32)
    key = jax.random.normal(kk, (S, N, embed_size), jnp.float32)
    value = jax.random.normal(kv, (S, N, embed_size), jnp.float32)
    params = init_params(kp, embed_size)

    fwd = jax.jit(functools.partial(self_attention_forward, heads=heads))
    out, weights = fwd(value, key, query, params)
    jax.block_until_ready((out, weights))

    assert out.shape == (L, N, embed_size)
    assert weights.shape == (N, L, S)
    assert bool(jnp.all(jnp.isfinite(out)))
    # softmax rows (averaged over heads) must sum to ~1
    assert bool(jnp.allclose(jnp.sum(weights, axis=-1), 1.0, atol=1e-3))
    print("KERNEL_OK")
</pallas_src>

<mosaic_0001>
module attributes {stable_mosaic.version = 11 : i64} {
  func.func @_fused_mha_ln_kernel(%arg0: i32, %arg1: i32, %arg2: memref<1x8x32xf32, #tpu.memory_space<vmem>>, %arg3: memref<1x8x32xf32, #tpu.memory_space<vmem>>, %arg4: memref<1x8x32xf32, #tpu.memory_space<vmem>>, %arg5: memref<1x8x32xbf16, #tpu.memory_space<vmem>>, %arg6: memref<1x8x32xbf16, #tpu.memory_space<vmem>>, %arg7: memref<1x8x32xbf16, #tpu.memory_space<vmem>>, %arg8: memref<1x1x8xf32, #tpu.memory_space<vmem>>, %arg9: memref<1x1x8xf32, #tpu.memory_space<vmem>>, %arg10: memref<1x1x8xf32, #tpu.memory_space<vmem>>, %arg11: memref<1x32x8xbf16, #tpu.memory_space<vmem>>, %arg12: memref<1x32xf32, #tpu.memory_space<vmem>>, %arg13: memref<1x32xf32, #tpu.memory_space<vmem>>, %arg14: memref<1x32xf32, #tpu.memory_space<vmem>>, %arg15: memref<1x8x32xf32, #tpu.memory_space<vmem>>, %arg16: memref<1x8x8xf32, #tpu.memory_space<vmem>>, %arg17: memref<8x32xf32, #tpu.memory_space<vmem>>, %arg18: memref<8x8xf32, #tpu.memory_space<vmem>>) attributes {dimension_semantics = [#tpu.dimension_semantics<parallel>, #tpu.dimension_semantics<arbitrary>], iteration_bounds = array<i64: 2, 4>, scalar_prefetch = 0 : i64, scratch_operands = 2 : i64, tpu.core_type = #tpu.core_type<tc>, window_params = [{transform_indices = @transform_0, window_bounds = array<i64: 1, 8, 32>}, {transform_indices = @transform_1, window_bounds = array<i64: 1, 8, 32>}, {transform_indices = @transform_2, window_bounds = array<i64: 1, 8, 32>}, {transform_indices = @transform_3, window_bounds = array<i64: 1, 8, 32>}, {transform_indices = @transform_4, window_bounds = array<i64: 1, 8, 32>}, {transform_indices = @transform_5, window_bounds = array<i64: 1, 8, 32>}, {transform_indices = @transform_6, window_bounds = array<i64: 1, 1, 8>}, {transform_indices = @transform_7, window_bounds = array<i64: 1, 1, 8>}, {transform_indices = @transform_8, window_bounds = array<i64: 1, 1, 8>}, {transform_indices = @transform_9, window_bounds = array<i64: 1, 32, 8>}, {pipeline_mode = #tpu.pipeline_mode<synchronous>, transform_indices = @transform_10, window_bounds = array<i64: 1, 32>}, {pipeline_mode = #tpu.pipeline_mode<synchronous>, transform_indices = @transform_11, window_bounds = array<i64: 1, 32>}, {pipeline_mode = #tpu.pipeline_mode<synchronous>, transform_indices = @transform_12, window_bounds = array<i64: 1, 32>}, {transform_indices = @transform_13, window_bounds = array<i64: 1, 8, 32>}, {transform_indices = @transform_14, window_bounds = array<i64: 1, 8, 8>}]} {
    %c0_i32 = arith.constant 0 : i32
    %0 = arith.cmpi eq, %arg1, %c0_i32 : i32
    %1 = arith.extui %0 : i1 to i32
    %c0_i32_0 = arith.constant 0 : i32
    %2 = arith.cmpi ne, %1, %c0_i32_0 : i32
    scf.if %2 {
      %cst_47 = arith.constant 0.000000e+00 : f32
      %63 = vector.broadcast %cst_47 : f32 to vector<8x32xf32>
      %c0_48 = arith.constant 0 : index
      %c0_49 = arith.constant 0 : index
      %64 = vector.load %arg17[%c0_48, %c0_49] : memref<8x32xf32, #tpu.memory_space<vmem>>, vector<8x32xf32>
      tpu.vector_store %arg17[%c0_48, %c0_49], %63 {strides = array<i32>} : memref<8x32xf32, #tpu.memory_space<vmem>>, vector<8x32xf32>,
      %cst_50 = arith.constant 0.000000e+00 : f32
      %65 = vector.broadcast %cst_50 : f32 to vector<8x8xf32>
      %c0_51 = arith.constant 0 : index
      %c0_52 = arith.constant 0 : index
      %66 = vector.load %arg18[%c0_51, %c0_52] : memref<8x8xf32, #tpu.memory_space<vmem>>, vector<8x8xf32>
      tpu.vector_store %arg18[%c0_51, %c0_52], %65 {strides = array<i32>} : memref<8x8xf32, #tpu.memory_space<vmem>>, vector<8x8xf32>,
    } else {
    }
    %c0 = arith.constant 0 : index
    %c0_1 = arith.constant 0 : index
    %c0_2 = arith.constant 0 : index
    %3 = vector.load %arg2[%c0, %c0_1, %c0_2] : memref<1x8x32xf32, #tpu.memory_space<vmem>>, vector<1x8x32xf32>
    %4 = vector.shape_cast %3 : vector<1x8x32xf32> to vector<8x32xf32>
    %5 = arith.truncf %4 : vector<8x32xf32> to vector<8x32xbf16>
    %c0_3 = arith.constant 0 : index
    %c0_4 = arith.constant 0 : index
    %c0_5 = arith.constant 0 : index
    %6 = vector.load %arg3[%c0_3, %c0_4, %c0_5] : memref<1x8x32xf32, #tpu.memory_space<vmem>>, vector<1x8x32xf32>
    %7 = vector.shape_cast %6 : vector<1x8x32xf32> to vector<8x32xf32>
    %8 = arith.truncf %7 : vector<8x32xf32> to vector<8x32xbf16>
    %c0_6 = arith.constant 0 : index
    %c0_7 = arith.constant 0 : index
    %c0_8 = arith.constant 0 : index
    %9 = vector.load %arg4[%c0_6, %c0_7, %c0_8] : memref<1x8x32xf32, #tpu.memory_space<vmem>>, vector<1x8x32xf32>
    %10 = vector.shape_cast %9 : vector<1x8x32xf32> to vector<8x32xf32>
    %11 = arith.truncf %10 : vector<8x32xf32> to vector<8x32xbf16>
    %c0_9 = arith.constant 0 : index
    %c0_10 = arith.constant 0 : index
    %c0_11 = arith.constant 0 : index
    %12 = vector.load %arg5[%c0_9, %c0_10, %c0_11] : memref<1x8x32xbf16, #tpu.memory_space<vmem>>, vector<1x8x32xbf16>
    %13 = vector.shape_cast %12 : vector<1x8x32xbf16> to vector<8x32xbf16>
    %cst = arith.constant dense<0.000000e+00> : vector<8x8xf32>
    %14 = tpu.matmul %5, %13, %cst {dimension_numbers = #tpu.dot_dimension_numbers<[1], [1], [0], [0], [0, 0, 1, 0], [], []>} : vector<8x32xbf16>, vector<8x32xbf16>, vector<8x8xf32> -> vector<8x8xf32>
    %c0_12 = arith.constant 0 : index
    %c0_13 = arith.constant 0 : index
    %c0_14 = arith.constant 0 : index
    %15 = vector.load %arg8[%c0_12, %c0_13, %c0_14] : memref<1x1x8xf32, #tpu.memory_space<vmem>>, vector<1x1x8xf32>
    %16 = vector.shape_cast %15 : vector<1x1x8xf32> to vector<1x8xf32>
    %17 = vector.broadcast %16 : vector<1x8xf32> to vector<8x8xf32>
    %18 = arith.addf %14, %17 : vector<8x8xf32>
    %cst_15 = arith.constant 0.353553385 : f32
    %19 = vector.broadcast %cst_15 : f32 to vector<8x8xf32>
    %20 = arith.mulf %18, %19 : vector<8x8xf32>
    %c0_16 = arith.constant 0 : index
    %c0_17 = arith.constant 0 : index
    %c0_18 = arith.constant 0 : index
    %21 = vector.load %arg6[%c0_16, %c0_17, %c0_18] : memref<1x8x32xbf16, #tpu.memory_space<vmem>>, vector<1x8x32xbf16>
    %22 = vector.shape_cast %21 : vector<1x8x32xbf16> to vector<8x32xbf16>
    %cst_19 = arith.constant dense<0.000000e+00> : vector<8x8xf32>
    %23 = tpu.matmul %8, %22, %cst_19 {dimension_numbers = #tpu.dot_dimension_numbers<[1], [1], [0], [0], [0, 0, 1, 0], [], []>} : vector<8x32xbf16>, vector<8x32xbf16>, vector<8x8xf32> -> vector<8x8xf32>
    %c0_20 = arith.constant 0 : index
    %c0_21 = arith.constant 0 : index
    %c0_22 = arith.constant 0 : index
    %24 = vector.load %arg9[%c0_20, %c0_21, %c0_22] : memref<1x1x8xf32, #tpu.memory_space<vmem>>, vector<1x1x8xf32>
    %25 = vector.shape_cast %24 : vector<1x1x8xf32> to vector<1x8xf32>
    %26 = vector.broadcast %25 : vector<1x8xf32> to vector<8x8xf32>
    %27 = arith.addf %23, %26 : vector<8x8xf32>
    %c0_23 = arith.constant 0 : index
    %c0_24 = arith.constant 0 : index
    %c0_25 = arith.constant 0 : index
    %28 = vector.load %arg7[%c0_23, %c0_24, %c0_25] : memref<1x8x32xbf16, #tpu.memory_space<vmem>>, vector<1x8x32xbf16>
    %29 = vector.shape_cast %28 : vector<1x8x32xbf16> to vector<8x32xbf16>
    %cst_26 = arith.constant dense<0.000000e+00> : vector<8x8xf32>
    %30 = tpu.matmul %11, %29, %cst_26 {dimension_numbers = #tpu.dot_dimension_numbers<[1], [1], [0], [0], [0, 0, 1, 0], [], []>} : vector<8x32xbf16>, vector<8x32xbf16>, vector<8x8xf32> -> vector<8x8xf32>
    %c0_27 = arith.constant 0 : index
    %c0_28 = arith.constant 0 : index
    %c0_29 = arith.constant 0 : index
    %31 = vector.load %arg10[%c0_27, %c0_28, %c0_29] : memref<1x1x8xf32, #tpu.memory_space<vmem>>, vector<1x1x8xf32>
    %32 = vector.shape_cast %31 : vector<1x1x8xf32> to vector<1x8xf32>
    %33 = vector.broadcast %32 : vector<1x8xf32> to vector<8x8xf32>
    %34 = arith.addf %30, %33 : vector<8x8xf32>
    %35 = arith.truncf %20 : vector<8x8xf32> to vector<8x8xbf16>
    %36 = arith.truncf %27 : vector<8x8xf32> to vector<8x8xbf16>
    %cst_30 = arith.constant dense<0.000000e+00> : vector<8x8xf32>
    %37 = tpu.matmul %35, %36, %cst_30 {dimension_numbers = #tpu.dot_dimension_numbers<[1], [1], [0], [0], [0, 0, 1, 0], [], []>} : vector<8x8xbf16>, vector<8x8xbf16>, vector<8x8xf32> -> vector<8x8xf32>
    %cst_31 = arith.constant dense<0xFF800000> : vector<8xf32>
    %38 = vector.multi_reduction <maximumf>, %37, %cst_31 [1] : vector<8x8xf32> to vector<8xf32>
    %39 = vector.shape_cast %38 : vector<8xf32> to vector<8x1xf32>
    %40 = vector.broadcast %39 : vector<8x1xf32> to vector<8x8xf32>
    %41 = arith.subf %37, %40 : vector<8x8xf32>
    %42 = math.exp %41 : vector<8x8xf32>
    %cst_32 = arith.constant dense<0.000000e+00> : vector<8xf32>
    %43 = vector.multi_reduction <add>, %42, %cst_32 [1] : vector<8x8xf32> to vector<8xf32>
    %44 = vector.shape_cast %43 : vector<8xf32> to vector<8x1xf32>
    %45 = vector.broadcast %44 : vector<8x1xf32> to vector<8x8xf32>
    %46 = arith.divf %42, %45 : vector<8x8xf32>
    %c0_33 = arith.constant 0 : index
    %c0_34 = arith.constant 0 : index
    %47 = vector.load %arg18[%c0_33, %c0_34] : memref<8x8xf32, #tpu.memory_space<vmem>>, vector<8x8xf32>
    %48 = arith.addf %47, %46 : vector<8x8xf32>
    %c0_35 = arith.constant 0 : index
    %c0_36 = arith.constant 0 : index
    %49 = vector.load %arg18[%c0_35, %c0_36] : memref<8x8xf32, #tpu.memory_space<vmem>>, vector<8x8xf32>
    tpu.vector_store %arg18[%c0_35, %c0_36], %48 {strides = array<i32>} : memref<8x8xf32, #tpu.memory_space<vmem>>, vector<8x8xf32>,
    %50 = arith.truncf %46 : vector<8x8xf32> to vector<8x8xbf16>
    %51 = arith.truncf %34 : vector<8x8xf32> to vector<8x8xbf16>
    %cst_37 = arith.constant dense<0.000000e+00> : vector<8x8xf32>
    %52 = tpu.matmul %50, %51, %cst_37 {dimension_numbers = #tpu.dot_dimension_numbers<[1], [0], [0], [1], [0, 0, 1, 1], [], []>} : vector<8x8xbf16>, vector<8x8xbf16>, vector<8x8xf32> -> vector<8x8xf32>
    %c0_38 = arith.constant 0 : index
    %c0_39 = arith.constant 0 : index
    %53 = vector.load %arg17[%c0_38, %c0_39] : memref<8x32xf32, #tpu.memory_space<vmem>>, vector<8x32xf32>
    %54 = arith.truncf %52 : vector<8x8xf32> to vector<8x8xbf16>
    %c0_40 = arith.constant 0 : index
    %c0_41 = arith.constant 0 : index
    %c0_42 = arith.constant 0 : index
    %55 = vector.load %arg11[%c0_40, %c0_41, %c0_42] : memref<1x32x8xbf16, #tpu.memory_space<vmem>>, vector<1x32x8xbf16>
    %56 = vector.shape_cast %55 : vector<1x32x8xbf16> to vector<32x8xbf16>
    %cst_43 = arith.constant dense<0.000000e+00> : vector<8x32xf32>
    %57 = tpu.matmul %54, %56, %cst_43 {dimension_numbers = #tpu.dot_dimension_numbers<[1], [1], [0], [0], [0, 0, 1, 0], [], []>} : vector<8x8xbf16>, vector<32x8xbf16>, vector<8x32xf32> -> vector<8x32xf32>
    %58 = arith.addf %53, %57 : vector<8x32xf32>
    %c0_44 = arith.constant 0 : index
    %c0_45 = arith.constant 0 : index
    %59 = vector.load %arg17[%c0_44, %c0_45] : memref<8x32xf32, #tpu.memory_space<vmem>>, vector<8x32xf32>
    tpu.vector_store %arg17[%c0_44, %c0_45], %58 {strides = array<i32>} : memref<8x32xf32, #tpu.memory_space<vmem>>, vector<8x32xf32>,
    %c3_i32 = arith.constant 3 : i32
    %60 = arith.cmpi eq, %arg1, %c3_i32 : i32
    %61 = arith.extui %60 : i1 to i32
    %c0_i32_46 = arith.constant 0 : i32
    %62 = arith.cmpi ne, %61, %c0_i32_46 : i32
    scf.if %62 {
      %c0_47 = arith.constant 0 : index
      %c0_48 = arith.constant 0 : index
      %63 = vector.load %arg17[%c0_47, %c0_48] : memref<8x32xf32, #tpu.memory_space<vmem>>, vector<8x32xf32>
      %c0_49 = arith.constant 0 : index
      %c0_50 = arith.constant 0 : index
      %64 = vector.load %arg12[%c0_49, %c0_50] : memref<1x32xf32, #tpu.memory_space<vmem>>, vector<1x32xf32>
      %65 = vector.broadcast %64 : vector<1x32xf32> to vector<8x32xf32>
      %66 = arith.addf %63, %65 : vector<8x32xf32>
      %67 = arith.addf %66, %4 : vector<8x32xf32>
      %cst_51 = arith.constant dense<0.000000e+00> : vector<8xf32>
      %68 = vector.multi_reduction <add>, %67, %cst_51 [1] : vector<8x32xf32> to vector<8xf32>
      %69 = vector.shape_cast %68 : vector<8xf32> to vector<8x1xf32>
      %cst_52 = arith.constant 3.200000e+01 : f32
      %70 = vector.broadcast %cst_52 : f32 to vector<8x1xf32>
      %71 = arith.divf %69, %70 : vector<8x1xf32>
      %72 = vector.broadcast %71 : vector<8x1xf32> to vector<8x32xf32>
      %73 = arith.subf %67, %72 : vector<8x32xf32>
      %74 = arith.mulf %73, %73 : vector<8x32xf32>
      %cst_53 = arith.constant dense<0.000000e+00> : vector<8xf32>
      %75 = vector.multi_reduction <add>, %74, %cst_53 [1] : vector<8x32xf32> to vector<8xf32>
      %76 = vector.shape_cast %75 : vector<8xf32> to vector<8x1xf32>
      %cst_54 = arith.constant 3.200000e+01 : f32
      %77 = vector.broadcast %cst_54 : f32 to vector<8x1xf32>
      %78 = arith.divf %76, %77 : vector<8x1xf32>
      %79 = vector.broadcast %71 : vector<8x1xf32> to vector<8x32xf32>
      %80 = arith.subf %67, %79 : vector<8x32xf32>
      %cst_55 = arith.constant 9.99999974E-6 : f32
      %81 = vector.broadcast %cst_55 : f32 to vector<8x1xf32>
      %82 = arith.addf %78, %81 : vector<8x1xf32>
      %83 = math.rsqrt %82 : vector<8x1xf32>
      %84 = vector.broadcast %83 : vector<8x1xf32> to vector<8x32xf32>
      %85 = arith.mulf %80, %84 : vector<8x32xf32>
      %c0_56 = arith.constant 0 : index
      %c0_57 = arith.constant 0 : index
      %86 = vector.load %arg13[%c0_56, %c0_57] : memref<1x32xf32, #tpu.memory_space<vmem>>, vector<1x32xf32>
      %87 = vector.broadcast %86 : vector<1x32xf32> to vector<8x32xf32>
      %88 = arith.mulf %85, %87 : vector<8x32xf32>
      %c0_58 = arith.constant 0 : index
      %c0_59 = arith.constant 0 : index
      %89 = vector.load %arg14[%c0_58, %c0_59] : memref<1x32xf32, #tpu.memory_space<vmem>>, vector<1x32xf32>
      %90 = vector.broadcast %89 : vector<1x32xf32> to vector<8x32xf32>
      %91 = arith.addf %88, %90 : vector<8x32xf32>
      %c0_60 = arith.constant 0 : index
      %c0_61 = arith.constant 0 : index
      %c0_62 = arith.constant 0 : index
      %92 = vector.load %arg15[%c0_60, %c0_61, %c0_62] : memref<1x8x32xf32, #tpu.memory_space<vmem>>, vector<1x8x32xf32>
      %93 = vector.shape_cast %92 : vector<1x8x32xf32> to vector<8x32xf32>
      %94 = vector.shape_cast %91 : vector<8x32xf32> to vector<1x8x32xf32>
      tpu.vector_store %arg15[%c0_60, %c0_61, %c0_62], %94 {strides = array<i32>} : memref<1x8x32xf32, #tpu.memory_space<vmem>>, vector<1x8x32xf32>,
      %c0_63 = arith.constant 0 : index
      %c0_64 = arith.constant 0 : index
      %95 = vector.load %arg18[%c0_63, %c0_64] : memref<8x8xf32, #tpu.memory_space<vmem>>, vector<8x8xf32>
      %cst_65 = arith.constant 2.500000e-01 : f32
      %96 = vector.broadcast %cst_65 : f32 to vector<8x8xf32>
      %97 = arith.mulf %95, %96 : vector<8x8xf32>
      %c0_66 = arith.constant 0 : index
      %c0_67 = arith.constant 0 : index
      %c0_68 = arith.constant 0 : index
      %98 = vector.load %arg16[%c0_66, %c0_67, %c0_68] : memref<1x8x8xf32, #tpu.memory_space<vmem>>, vector<1x8x8xf32>
      %99 = vector.shape_cast %98 : vector<1x8x8xf32> to vector<8x8xf32>
      %100 = vector.shape_cast %97 : vector<8x8xf32> to vector<1x8x8xf32>
      tpu.vector_store %arg16[%c0_66, %c0_67, %c0_68], %100 {strides = array<i32>} : memref<1x8x8xf32, #tpu.memory_space<vmem>>, vector<1x8x8xf32>,
    } else {
    }
    return
  }
  func.func @transform_0(%arg0: i32, %arg1: i32) -> (i32, i32, i32) {
    %c0_i32 = arith.constant 0 : i32
    %c0_i32_0 = arith.constant 0 : i32
    %c0_i32_1 = arith.constant 0 : i32
    return %arg0, %c0_i32, %c0_i32_0 : i32, i32, i32
  }
  func.func @transform_1(%arg0: i32, %arg1: i32) -> (i32, i32, i32) {
    %c0_i32 = arith.constant 0 : i32
    %c0_i32_0 = arith.constant 0 : i32
    %c0_i32_1 = arith.constant 0 : i32
    return %arg0, %c0_i32, %c0_i32_0 : i32, i32, i32
  }
  func.func @transform_2(%arg0: i32, %arg1: i32) -> (i32, i32, i32) {
    %c0_i32 = arith.constant 0 : i32
    %c0_i32_0 = arith.constant 0 : i32
    %c0_i32_1 = arith.constant 0 : i32
    return %arg0, %c0_i32, %c0_i32_0 : i32, i32, i32
  }
  func.func @transform_3(%arg0: i32, %arg1: i32) -> (i32, i32, i32) {
    %c0_i32 = arith.constant 0 : i32
    %c0_i32_0 = arith.constant 0 : i32
    %c0_i32_1 = arith.constant 0 : i32
    return %arg1, %c0_i32, %c0_i32_0 : i32, i32, i32
  }
  func.func @transform_4(%arg0: i32, %arg1: i32) -> (i32, i32, i32) {
    %c0_i32 = arith.constant 0 : i32
    %c0_i32_0 = arith.constant 0 : i32
    %c0_i32_1 = arith.constant 0 : i32
    return %arg1, %c0_i32, %c0_i32_0 : i32, i32, i32
  }
  func.func @transform_5(%arg0: i32, %arg1: i32) -> (i32, i32, i32) {
    %c0_i32 = arith.constant 0 : i32
    %c0_i32_0 = arith.constant 0 : i32
    %c0_i32_1 = arith.constant 0 : i32
    return %arg1, %c0_i32, %c0_i32_0 : i32, i32, i32
  }
  func.func @transform_6(%arg0: i32, %arg1: i32) -> (i32, i32, i32) {
    %c0_i32 = arith.constant 0 : i32
    %c0_i32_0 = arith.constant 0 : i32
    %c0_i32_1 = arith.constant 0 : i32
    return %arg1, %c0_i32, %c0_i32_0 : i32, i32, i32
  }
  func.func @transform_7(%arg0: i32, %arg1: i32) -> (i32, i32, i32) {
    %c0_i32 = arith.constant 0 : i32
    %c0_i32_0 = arith.constant 0 : i32
    %c0_i32_1 = arith.constant 0 : i32
    return %arg1, %c0_i32, %c0_i32_0 : i32, i32, i32
  }
  func.func @transform_8(%arg0: i32, %arg1: i32) -> (i32, i32, i32) {
    %c0_i32 = arith.constant 0 : i32
    %c0_i32_0 = arith.constant 0 : i32
    %c0_i32_1 = arith.constant 0 : i32
    return %arg1, %c0_i32, %c0_i32_0 : i32, i32, i32
  }
  func.func @transform_9(%arg0: i32, %arg1: i32) -> (i32, i32, i32) {
    %c0_i32 = arith.constant 0 : i32
    %c0_i32_0 = arith.constant 0 : i32
    %c0_i32_1 = arith.constant 0 : i32
    return %arg1, %c0_i32, %c0_i32_0 : i32, i32, i32
  }
  func.func @transform_10(%arg0: i32, %arg1: i32) -> (i32, i32) {
    %c0_i32 = arith.constant 0 : i32
    %c0_i32_0 = arith.constant 0 : i32
    %c0_i32_1 = arith.constant 0 : i32
    return %c0_i32, %c0_i32_0 : i32, i32
  }
  func.func @transform_11(%arg0: i32, %arg1: i32) -> (i32, i32) {
    %c0_i32 = arith.constant 0 : i32
    %c0_i32_0 = arith.constant 0 : i32
    %c0_i32_1 = arith.constant 0 : i32
    return %c0_i32, %c0_i32_0 : i32, i32
  }
  func.func @transform_12(%arg0: i32, %arg1: i32) -> (i32, i32) {
    %c0_i32 = arith.constant 0 : i32
    %c0_i32_0 = arith.constant 0 : i32
    %c0_i32_1 = arith.constant 0 : i32
    return %c0_i32, %c0_i32_0 : i32, i32
  }
  func.func @transform_13(%arg0: i32, %arg1: i32) -> (i32, i32, i32) {
    %c0_i32 = arith.constant 0 : i32
    %c0_i32_0 = arith.constant 0 : i32
    %c0_i32_1 = arith.constant 0 : i32
    return %arg0, %c0_i32, %c0_i32_0 : i32, i32, i32
  }
  func.func @transform_14(%arg0: i32, %arg1: i32) -> (i32, i32, i32) {
    %c0_i32 = arith.constant 0 : i32
    %c0_i32_0 = arith.constant 0 : i32
    %c0_i32_1 = arith.constant 0 : i32
    return %arg0, %c0_i32, %c0_i32_0 : i32, i32, i32
  }
}

</mosaic_0001>

<llo_original>
// kernel: self_attention_forward.1
$region0: #{self_attention_forward.1}
  #allocation0 [shape = 'u32[]', space=smem, size = 0x4, offset = 0x4, fixed_abs, tag = 'smem constant byte address 0x4 - core index']
  #allocation1 [shape = 'u32[144,128]{1,0:T(1,128)}', space=vmem, size = 0x12000, scoped, tag = 'internal scratch']
  #allocation2 [shape = 'f32[8,32]{1,0:T(8,128)}', space=vmem, size = 0x1000, scoped, tag = 'scratch operand']
  #allocation3 [shape = 'f32[8,8]{1,0:T(8,128)}', space=vmem, size = 0x1000, scoped, tag = 'scratch operand']
  %s0 = inlined_call_operand.vmem [shape: f32[2,8,32], index: 0, kind: input, shape index: {}]
  %s1 = inlined_call_operand.vmem [shape: f32[2,8,32], index: 1, kind: input, shape index: {}]
  %s2 = inlined_call_operand.vmem [shape: f32[2,8,32], index: 2, kind: input, shape index: {}]
  %s3 = inlined_call_operand.vmem [shape: bf16[4,8,32], index: 3, kind: input, shape index: {}]
  %s4 = inlined_call_operand.vmem [shape: bf16[4,8,32], index: 4, kind: input, shape index: {}]
  %s5 = inlined_call_operand.vmem [shape: bf16[4,8,32], index: 5, kind: input, shape index: {}]
  %s6 = inlined_call_operand.vmem [shape: f32[4,1,8], index: 6, kind: input, shape index: {}]
  %s7 = inlined_call_operand.vmem [shape: f32[4,1,8], index: 7, kind: input, shape index: {}]
  %s8 = inlined_call_operand.vmem [shape: f32[4,1,8], index: 8, kind: input, shape index: {}]
  %s9 = inlined_call_operand.vmem [shape: bf16[4,32,8], index: 9, kind: input, shape index: {}]
  %s10 = inlined_call_operand.vmem [shape: f32[1,32], index: 10, kind: input, shape index: {}]
  %s11 = inlined_call_operand.vmem [shape: f32[1,32], index: 11, kind: input, shape index: {}]
  %s12 = inlined_call_operand.vmem [shape: f32[1,32], index: 12, kind: input, shape index: {}]
  %s13 = inlined_call_operand.vmem [shape: f32[2,8,32], index: 13, kind: output, shape index: {0}]
  %s14 = inlined_call_operand.hbm [shape: f32[2,8,8], index: 14, kind: output, shape index: {1}]
  %15 = xla_tuple %s13, %s14
  %s16 = sld [smem:[#allocation0]]
  $region101: #{self_attention_forward.1} parent=0
    _
  %s18 = ssub.s32 1, %s16
  %s19 = scalar_select 0, %s18, %s16
  $region1: #{self_attention_forward.1} parent=0
    #allocation4 [shape = 'u8[8192]{0}', space=vmem, size = 0x2000, scoped, tag = 'output window, operand 1']
    #allocation5 [shape = 's32[2]{0}', space=sflag, size = 0x8, scoped, tag = 'scoped memory for self_attention_forward.1']
    %20 = vsyncpa [#allocation5], 0
    %s21 = scalar_lea.sflag [#allocation5], 1
    %22 = vsyncpa %s21, 0
    loop: start=0, step=1, limit=10
    $region2: #{self_attention_forward.1} parent=1 // loop_pre_header
      _
    $region3: #{self_attention_forward.1} parent=1 // loop_header
      %s24 = sphi 0, %s28
      %p25 = scmp.ge.s32.totalorder %s24, 10
      %s31 = sphi 0, %s43
      %s32 = sphi 0, %s39
      %s33 = sphi 0, %s31
      %s34 = sphi 0, %s32
      %s35 = sphi 0, %s33
      %s36 = sphi 0, %s34
      %s46 = sphi 0, %s48
      %s49 = sphi 0, %s46
      %s50 = sphi 0, %s49
      %s66 = sphi 0, %s50
      %s72 = sphi 0, %s74
      %s75 = sphi 0, %s72
      %s76 = sphi 0, %s75
      %s92 = sphi 0, %s76
      %s98 = sphi 0, %s100
      %s101 = sphi 0, %s98
      %s102 = sphi 0, %s101
      %s118 = sphi 0, %s102
      %s124 = sphi 0, %s126
      %s127 = sphi 0, %s124
      %s128 = sphi 0, %s127
      %s144 = sphi 0, %s128
      %s150 = sphi 0, %s152
      %s153 = sphi 0, %s150
      %s154 = sphi 0, %s153
      %s170 = sphi 0, %s154
      %s176 = sphi 0, %s178
      %s179 = sphi 0, %s176
      %s180 = sphi 0, %s179
      %s196 = sphi 0, %s180
      %s202 = sphi 0, %s204
      %s205 = sphi 0, %s202
      %s206 = sphi 0, %s205
      %s222 = sphi 0, %s206
      %s228 = sphi 0, %s230
      %s231 = sphi 0, %s228
      %s232 = sphi 0, %s231
      %s248 = sphi 0, %s232
      %s254 = sphi 0, %s256
      %s257 = sphi 0, %s254
      %s258 = sphi 0, %s257
      %s274 = sphi 0, %s258
      %s280 = sphi 0, %s282
      %s283 = sphi 0, %s280
      %s284 = sphi 0, %s283
      %s300 = sphi 0, %s284
      %s304 = sphi 0, %s304
      %s306 = sphi 0, %s304
      %s307 = sphi 0, %s306
      %s321 = sphi 0, %s307
      %s325 = sphi 0, %s325
      %s327 = sphi 0, %s325
      %s328 = sphi 0, %s327
      %s342 = sphi 0, %s328
      %s346 = sphi 0, %s346
      %s348 = sphi 0, %s346
      %s349 = sphi 0, %s348
      %s363 = sphi 0, %s349
      %s369 = sphi 0, %s371
      %s372 = sphi 0, %s369
      %s373 = sphi 0, %s372
      %s389 = sphi 0, %s373
      %s395 = sphi 0, %s397
      %s398 = sphi 0, %s395
      %s399 = sphi 0, %s398
      %s415 = sphi 0, %s399
    $region4: #{self_attention_forward.1} parent=1 // loop_header_branch
      %27 = sbr.rel (%p25) target = $region8
    $region5: #{self_attention_forward.1} parent=1 // loop_body
      %s29 = ssub.s32 %s24, 1
      %s30 = ssub.s32 %s24, 2
      %s37 = sadd.s32 1, %s32
      %p38 = scmp.ge.s32.totalorder %s37, 4
      %s39 = scalar_select %p38, 0, %s37
      %s40 = sadd.s32 1, %s31
      %s41 = scalar_select %p38, %s40, %s31
      %p42 = scmp.ge.s32.totalorder %s41, 2
      %s43 = scalar_select %p42, 0, %s41
      %s44 = ssub.s32 %s31, %s43
      %p45 = scmp.eq.s32.totalorder %s44, 0
      %s47 = sadd.s32 %s46, 1
      %s48 = scalar_select %p45, %s46, %s47
      %p51 = pneg %p45
      %p52 = scmp.eq.s32.totalorder %s24, 7
      %p53 = por %p51, %p52
      %p54 = scmp.ne.s32.totalorder %s46, %s49
      %p55 = scmp.eq.s32.totalorder %s24, 0
      %p56 = por %p54, %p55
      %p57 = scmp.ne.s32.totalorder %s46, %s49
      %p58 = scmp.eq.s32.totalorder %s29, 7
      %p59 = por %p57, %p58
      %p60 = scmp.ne.s32.totalorder %s49, %s50
      %p61 = scmp.eq.s32.totalorder %s29, 0
      %p62 = por %p60, %p61
      %p63 = scmp.ne.s32.totalorder %s49, %s50
      %p64 = scmp.eq.s32.totalorder %s30, 7
      %p65 = por %p63, %p64
      %p67 = scmp.ne.s32.totalorder %s50, %s66
      %p68 = scmp.eq.s32.totalorder %s30, 0
      %p69 = por %p67, %p68
      %s70 = ssub.s32 %s31, %s43
      %p71 = scmp.eq.s32.totalorder %s70, 0
      %s73 = sadd.s32 %s72, 1
      %s74 = scalar_select %p71, %s72, %s73
      %p77 = pneg %p71
      %p78 = scmp.eq.s32.totalorder %s24, 7
      %p79 = por %p77, %p78
      %p80 = scmp.ne.s32.totalorder %s72, %s75
      %p81 = scmp.eq.s32.totalorder %s24, 0
      %p82 = por %p80, %p81
      %p83 = scmp.ne.s32.totalorder %s72, %s75
      %p84 = scmp.eq.s32.totalorder %s29, 7
      %p85 = por %p83, %p84
      %p86 = scmp.ne.s32.totalorder %s75, %s76
      %p87 = scmp.eq.s32.totalorder %s29, 0
      %p88 = por %p86, %p87
      %p89 = scmp.ne.s32.totalorder %s75, %s76
      %p90 = scmp.eq.s32.totalorder %s30, 7
      %p91 = por %p89, %p90
      %p93 = scmp.ne.s32.totalorder %s76, %s92
      %p94 = scmp.eq.s32.totalorder %s30, 0
      %p95 = por %p93, %p94
      %s96 = ssub.s32 %s31, %s43
      %p97 = scmp.eq.s32.totalorder %s96, 0
      %s99 = sadd.s32 %s98, 1
      %s100 = scalar_select %p97, %s98, %s99
      %p103 = pneg %p97
      %p104 = scmp.eq.s32.totalorder %s24, 7
      %p105 = por %p103, %p104
      %p106 = scmp.ne.s32.totalorder %s98, %s101
      %p107 = scmp.eq.s32.totalorder %s24, 0
      %p108 = por %p106, %p107
      %p109 = scmp.ne.s32.totalorder %s98, %s101
      %p110 = scmp.eq.s32.totalorder %s29, 7
      %p111 = por %p109, %p110
      %p112 = scmp.ne.s32.totalorder %s101, %s102
      %p113 = scmp.eq.s32.totalorder %s29, 0
      %p114 = por %p112, %p113
      %p115 = scmp.ne.s32.totalorder %s101, %s102
      %p116 = scmp.eq.s32.totalorder %s30, 7
      %p117 = por %p115, %p116
      %p119 = scmp.ne.s32.totalorder %s102, %s118
      %p120 = scmp.eq.s32.totalorder %s30, 0
      %p121 = por %p119, %p120
      %s122 = ssub.s32 %s32, %s39
      %p123 = scmp.eq.s32.totalorder %s122, 0
      %s125 = sadd.s32 %s124, 1
      %s126 = scalar_select %p123, %s124, %s125
      %p129 = pneg %p123
      %p130 = scmp.eq.s32.totalorder %s24, 7
      %p131 = por %p129, %p130
      %p132 = scmp.ne.s32.totalorder %s124, %s127
      %p133 = scmp.eq.s32.totalorder %s24, 0
      %p134 = por %p132, %p133
      %p135 = scmp.ne.s32.totalorder %s124, %s127
      %p136 = scmp.eq.s32.totalorder %s29, 7
      %p137 = por %p135, %p136
      %p138 = scmp.ne.s32.totalorder %s127, %s128
      %p139 = scmp.eq.s32.totalorder %s29, 0
      %p140 = por %p138, %p139
      %p141 = scmp.ne.s32.totalorder %s127, %s128
      %p142 = scmp.eq.s32.totalorder %s30, 7
      %p143 = por %p141, %p142
      %p145 = scmp.ne.s32.totalorder %s128, %s144
      %p146 = scmp.eq.s32.totalorder %s30, 0
      %p147 = por %p145, %p146
      %s148 = ssub.s32 %s32, %s39
      %p149 = scmp.eq.s32.totalorder %s148, 0
      %s151 = sadd.s32 %s150, 1
      %s152 = scalar_select %p149, %s150, %s151
      %p155 = pneg %p149
      %p156 = scmp.eq.s32.totalorder %s24, 7
      %p157 = por %p155, %p156
      %p158 = scmp.ne.s32.totalorder %s150, %s153
      %p159 = scmp.eq.s32.totalorder %s24, 0
      %p160 = por %p158, %p159
      %p161 = scmp.ne.s32.totalorder %s150, %s153
      %p162 = scmp.eq.s32.totalorder %s29, 7
      %p163 = por %p161, %p162
      %p164 = scmp.ne.s32.totalorder %s153, %s154
      %p165 = scmp.eq.s32.totalorder %s29, 0
      %p166 = por %p164, %p165
      %p167 = scmp.ne.s32.totalorder %s153, %s154
      %p168 = scmp.eq.s32.totalorder %s30, 7
      %p169 = por %p167, %p168
      %p171 = scmp.ne.s32.totalorder %s154, %s170
      %p172 = scmp.eq.s32.totalorder %s30, 0
      %p173 = por %p171, %p172
      %s174 = ssub.s32 %s32, %s39
      %p175 = scmp.eq.s32.totalorder %s174, 0
      %s177 = sadd.s32 %s176, 1
      %s178 = scalar_select %p175, %s176, %s177
      %p181 = pneg %p175
      %p182 = scmp.eq.s32.totalorder %s24, 7
      %p183 = por %p181, %p182
      %p184 = scmp.ne.s32.totalorder %s176, %s179
      %p185 = scmp.eq.s32.totalorder %s24, 0
      %p186 = por %p184, %p185
      %p187 = scmp.ne.s32.totalorder %s176, %s179
      %p188 = scmp.eq.s32.totalorder %s29, 7
      %p189 = por %p187, %p188
      %p190 = scmp.ne.s32.totalorder %s179, %s180
      %p191 = scmp.eq.s32.totalorder %s29, 0
      %p192 = por %p190, %p191
      %p193 = scmp.ne.s32.totalorder %s179, %s180
      %p194 = scmp.eq.s32.totalorder %s30, 7
      %p195 = por %p193, %p194
      %p197 = scmp.ne.s32.totalorder %s180, %s196
      %p198 = scmp.eq.s32.totalorder %s30, 0
      %p199 = por %p197, %p198
      %s200 = ssub.s32 %s32, %s39
      %p201 = scmp.eq.s32.totalorder %s200, 0
      %s203 = sadd.s32 %s202, 1
      %s204 = scalar_select %p201, %s202, %s203
      %p207 = pneg %p201
      %p208 = scmp.eq.s32.totalorder %s24, 7
      %p209 = por %p207, %p208
      %p210 = scmp.ne.s32.totalorder %s202, %s205
      %p211 = scmp.eq.s32.totalorder %s24, 0
      %p212 = por %p210, %p211
      %p213 = scmp.ne.s32.totalorder %s202, %s205
      %p214 = scmp.eq.s32.totalorder %s29, 7
      %p215 = por %p213, %p214
      %p216 = scmp.ne.s32.totalorder %s205, %s206
      %p217 = scmp.eq.s32.totalorder %s29, 0
      %p218 = por %p216, %p217
      %p219 = scmp.ne.s32.totalorder %s205, %s206
      %p220 = scmp.eq.s32.totalorder %s30, 7
      %p221 = por %p219, %p220
      %p223 = scmp.ne.s32.totalorder %s206, %s222
      %p224 = scmp.eq.s32.totalorder %s30, 0
      %p225 = por %p223, %p224
      %s226 = ssub.s32 %s32, %s39
      %p227 = scmp.eq.s32.totalorder %s226, 0
      %s229 = sadd.s32 %s228, 1
      %s230 = scalar_select %p227, %s228, %s229
      %p233 = pneg %p227
      %p234 = scmp.eq.s32.totalorder %s24, 7
      %p235 = por %p233, %p234
      %p236 = scmp.ne.s32.totalorder %s228, %s231
      %p237 = scmp.eq.s32.totalorder %s24, 0
      %p238 = por %p236, %p237
      %p239 = scmp.ne.s32.totalorder %s228, %s231
      %p240 = scmp.eq.s32.totalorder %s29, 7
      %p241 = por %p239, %p240
      %p242 = scmp.ne.s32.totalorder %s231, %s232
      %p243 = scmp.eq.s32.totalorder %s29, 0
      %p244 = por %p242, %p243
      %p245 = scmp.ne.s32.totalorder %s231, %s232
      %p246 = scmp.eq.s32.totalorder %s30, 7
      %p247 = por %p245, %p246
      %p249 = scmp.ne.s32.totalorder %s232, %s248
      %p250 = scmp.eq.s32.totalorder %s30, 0
      %p251 = por %p249, %p250
      %s252 = ssub.s32 %s32, %s39
      %p253 = scmp.eq.s32.totalorder %s252, 0
      %s255 = sadd.s32 %s254, 1
      %s256 = scalar_select %p253, %s254, %s255
      %p259 = pneg %p253
      %p260 = scmp.eq.s32.totalorder %s24, 7
      %p261 = por %p259, %p260
      %p262 = scmp.ne.s32.totalorder %s254, %s257
      %p263 = scmp.eq.s32.totalorder %s24, 0
      %p264 = por %p262, %p263
      %p265 = scmp.ne.s32.totalorder %s254, %s257
      %p266 = scmp.eq.s32.totalorder %s29, 7
      %p267 = por %p265, %p266
      %p268 = scmp.ne.s32.totalorder %s257, %s258
      %p269 = scmp.eq.s32.totalorder %s29, 0
      %p270 = por %p268, %p269
      %p271 = scmp.ne.s32.totalorder %s257, %s258
      %p272 = scmp.eq.s32.totalorder %s30, 7
      %p273 = por %p271, %p272
      %p275 = scmp.ne.s32.totalorder %s258, %s274
      %p276 = scmp.eq.s32.totalorder %s30, 0
      %p277 = por %p275, %p276
      %s278 = ssub.s32 %s32, %s39
      %p279 = scmp.eq.s32.totalorder %s278, 0
      %s281 = sadd.s32 %s280, 1
      %s282 = scalar_select %p279, %s280, %s281
      %p285 = pneg %p279
      %p286 = scmp.eq.s32.totalorder %s24, 7
      %p287 = por %p285, %p286
      %p288 = scmp.ne.s32.totalorder %s280, %s283
      %p289 = scmp.eq.s32.totalorder %s24, 0
      %p290 = por %p288, %p289
      %p291 = scmp.ne.s32.totalorder %s280, %s283
      %p292 = scmp.eq.s32.totalorder %s29, 7
      %p293 = por %p291, %p292
      %p294 = scmp.ne.s32.totalorder %s283, %s284
      %p295 = scmp.eq.s32.totalorder %s29, 0
      %p296 = por %p294, %p295
      %p297 = scmp.ne.s32.totalorder %s283, %s284
      %p298 = scmp.eq.s32.totalorder %s30, 7
      %p299 = por %p297, %p298
      %p301 = scmp.ne.s32.totalorder %s284, %s300
      %p302 = scmp.eq.s32.totalorder %s30, 0
      %p303 = por %p301, %p302
      %s305 = sadd.s32 %s304, 1
      %p308 = scmp.eq.s32.totalorder %s24, 7
      %p309 = scmp.ne.s32.totalorder %s304, %s306
      %p310 = scmp.eq.s32.totalorder %s24, 0
      %p311 = por %p309, %p310
      %p312 = scmp.ne.s32.totalorder %s304, %s306
      %p313 = scmp.eq.s32.totalorder %s29, 7
      %p314 = por %p312, %p313
      %p315 = scmp.ne.s32.totalorder %s306, %s307
      %p316 = scmp.eq.s32.totalorder %s29, 0
      %p317 = por %p315, %p316
      %p318 = scmp.ne.s32.totalorder %s306, %s307
      %p319 = scmp.eq.s32.totalorder %s30, 7
      %p320 = por %p318, %p319
      %p322 = scmp.ne.s32.totalorder %s307, %s321
      %p323 = scmp.eq.s32.totalorder %s30, 0
      %p324 = por %p322, %p323
      %s326 = sadd.s32 %s325, 1
      %p329 = scmp.eq.s32.totalorder %s24, 7
      %p330 = scmp.ne.s32.totalorder %s325, %s327
      %p331 = scmp.eq.s32.totalorder %s24, 0
      %p332 = por %p330, %p331
      %p333 = scmp.ne.s32.totalorder %s325, %s327
      %p334 = scmp.eq.s32.totalorder %s29, 7
      %p335 = por %p333, %p334
      %p336 = scmp.ne.s32.totalorder %s327, %s328
      %p337 = scmp.eq.s32.totalorder %s29, 0
      %p338 = por %p336, %p337
      %p339 = scmp.ne.s32.totalorder %s327, %s328
      %p340 = scmp.eq.s32.totalorder %s30, 7
      %p341 = por %p339, %p340
      %p343 = scmp.ne.s32.totalorder %s328, %s342
      %p344 = scmp.eq.s32.totalorder %s30, 0
      %p345 = por %p343, %p344
      %s347 = sadd.s32 %s346, 1
      %p350 = scmp.eq.s32.totalorder %s24, 7
      %p351 = scmp.ne.s32.totalorder %s346, %s348
      %p352 = scmp.eq.s32.totalorder %s24, 0
      %p353 = por %p351, %p352
      %p354 = scmp.ne.s32.totalorder %s346, %s348
      %p355 = scmp.eq.s32.totalorder %s29, 7
      %p356 = por %p354, %p355
      %p357 = scmp.ne.s32.totalorder %s348, %s349
      %p358 = scmp.eq.s32.totalorder %s29, 0
      %p359 = por %p357, %p358
      %p360 = scmp.ne.s32.totalorder %s348, %s349
      %p361 = scmp.eq.s32.totalorder %s30, 7
      %p362 = por %p360, %p361
      %p364 = scmp.ne.s32.totalorder %s349, %s363
      %p365 = scmp.eq.s32.totalorder %s30, 0
      %p366 = por %p364, %p365
      %s367 = ssub.s32 %s31, %s43
      %p368 = scmp.eq.s32.totalorder %s367, 0
      %s370 = sadd.s32 %s369, 1
      %s371 = scalar_select %p368, %s369, %s370
      %p374 = pneg %p368
      %p375 = scmp.eq.s32.totalorder %s24, 7
      %p376 = por %p374, %p375
      %p377 = scmp.ne.s32.totalorder %s369, %s372
      %p378 = scmp.eq.s32.totalorder %s24, 0
      %p379 = por %p377, %p378
      %p380 = scmp.ne.s32.totalorder %s369, %s372
      %p381 = scmp.eq.s32.totalorder %s29, 7
      %p382 = por %p380, %p381
      %p383 = scmp.ne.s32.totalorder %s372, %s373
      %p384 = scmp.eq.s32.totalorder %s29, 0
      %p385 = por %p383, %p384
      %p386 = scmp.ne.s32.totalorder %s372, %s373
      %p387 = scmp.eq.s32.totalorder %s30, 7
      %p388 = por %p386, %p387
      %p390 = scmp.ne.s32.totalorder %s373, %s389
      %p391 = scmp.eq.s32.totalorder %s30, 0
      %p392 = por %p390, %p391
      %s393 = ssub.s32 %s31, %s43
      %p394 = scmp.eq.s32.totalorder %s393, 0
      %s396 = sadd.s32 %s395, 1
      %s397 = scalar_select %p394, %s395, %s396
      %p400 = pneg %p394
      %p401 = scmp.eq.s32.totalorder %s24, 7
      %p402 = por %p400, %p401
      %p403 = scmp.ne.s32.totalorder %s395, %s398
      %p404 = scmp.eq.s32.totalorder %s24, 0
      %p405 = por %p403, %p404
      %p406 = scmp.ne.s32.totalorder %s395, %s398
      %p407 = scmp.eq.s32.totalorder %s29, 7
      %p408 = por %p406, %p407
      %p409 = scmp.ne.s32.totalorder %s398, %s399
      %p410 = scmp.eq.s32.totalorder %s29, 0
      %p411 = por %p409, %p410
      %p412 = scmp.ne.s32.totalorder %s398, %s399
      %p413 = scmp.eq.s32.totalorder %s30, 7
      %p414 = por %p412, %p413
      %p416 = scmp.ne.s32.totalorder %s399, %s415
      %p417 = scmp.eq.s32.totalorder %s30, 0
      %p418 = por %p416, %p417
      %p419 = scmp.le.s32.totalorder 1, %s24
      %p420 = scmp.lt.s32.totalorder %s24, 9
      %p421 = pnand %p419, %p420
      %p422 = pneg %p421
      // Predicated region
      $region9: #{self_attention_forward.1} parent=5 // pred_check
        _
      $region10: #{self_attention_forward.1} parent=5 // pred_check_branch
        %424 = sbr.rel (%p421) target = $region12
      $region11: #{self_attention_forward.1} parent=5 // pred_region
        %s425 = ssub.s32 %s24, 1
        // Predicated region
        $region13: #{self_attention_forward.1} parent=11 // pred_check
          %p426 = pneg %p317
        $region14: #{self_attention_forward.1} parent=11 // pred_check_branch
          %428 = sbr.rel (%p426) target = $region16
        $region15: #{self_attention_forward.1} parent=11 // pred_region
          _
        $region16: #{self_attention_forward.1} parent=11 // pred_fallthru
          _
        // Predicated region
        $region17: #{self_attention_forward.1} parent=11 // pred_check
          %p429 = pneg %p338
        $region18: #{self_attention_forward.1} parent=11 // pred_check_branch
          %431 = sbr.rel (%p429) target = $region20
        $region19: #{self_attention_forward.1} parent=11 // pred_region
          _
        $region20: #{self_attention_forward.1} parent=11 // pred_fallthru
          _
        // Predicated region
        $region21: #{self_attention_forward.1} parent=11 // pred_check
          %p432 = pneg %p359
        $region22: #{self_attention_forward.1} parent=11 // pred_check_branch
          %434 = sbr.rel (%p432) target = $region24
        $region23: #{self_attention_forward.1} parent=11 // pred_region
          _
        $region24: #{self_attention_forward.1} parent=11 // pred_fallthru
          _
      $region12: #{self_attention_forward.1} parent=5 // pred_fallthru
        _
      %p435 = scmp.lt.s32.totalorder %s24, 8
      // Predicated region
      $region25: #{self_attention_forward.1} parent=5 // pred_check
        %p436 = pneg %p435
      $region26: #{self_attention_forward.1} parent=5 // pred_check_branch
        %438 = sbr.rel (%p436) target = $region28
      $region27: #{self_attention_forward.1} parent=5 // pred_region
        // Predicated region
        $region29: #{self_attention_forward.1} parent=27 // pred_check
          %p439 = pneg %p56
        $region30: #{self_attention_forward.1} parent=27 // pred_check_branch
          %441 = sbr.rel (%p439) target = $region32
        $region31: #{self_attention_forward.1} parent=27 // pred_region
          %p442 = scmp.lt.s32.totalorder %s31, 1
          %s443 = scalar_select %p442, %s31, 1
          %s444 = smul.addr %s443, 8
          %s445 = scalar_lea.vmem %s0, %s444
        $region32: #{self_attention_forward.1} parent=27 // pred_fallthru
          _
        // Predicated region
        $region33: #{self_attention_forward.1} parent=27 // pred_check
          %p446 = pneg %p82
        $region34: #{self_attention_forward.1} parent=27 // pred_check_branch
          %448 = sbr.rel (%p446) target = $region36
        $region35: #{self_attention_forward.1} parent=27 // pred_region
          %p449 = scmp.lt.s32.totalorder %s31, 1
          %s450 = scalar_select %p449, %s31, 1
          %s451 = smul.addr %s450, 8
          %s452 = scalar_lea.vmem %s1, %s451
        $region36: #{self_attention_forward.1} parent=27 // pred_fallthru
          _
        // Predicated region
        $region37: #{self_attention_forward.1} parent=27 // pred_check
          %p453 = pneg %p108
        $region38: #{self_attention_forward.1} parent=27 // pred_check_branch
          %455 = sbr.rel (%p453) target = $region40
        $region39: #{self_attention_forward.1} parent=27 // pred_region
          %p456 = scmp.lt.s32.totalorder %s31, 1
          %s457 = scalar_select %p456, %s31, 1
          %s458 = smul.addr %s457, 8
          %s459 = scalar_lea.vmem %s2, %s458
        $region40: #{self_attention_forward.1} parent=27 // pred_fallthru
          _
        // Predicated region
        $region41: #{self_attention_forward.1} parent=27 // pred_check
          %p460 = pneg %p134
        $region42: #{self_attention_forward.1} parent=27 // pred_check_branch
          %462 = sbr.rel (%p460) target = $region44
        $region43: #{self_attention_forward.1} parent=27 // pred_region
          %p463 = scmp.lt.s32.totalorder %s32, 3
          %s464 = scalar_select %p463, %s32, 3
          %s465 = smul.addr %s464, 4
          %s466 = scalar_lea.vmem %s3, %s465
        $region44: #{self_attention_forward.1} parent=27 // pred_fallthru
          _
        // Predicated region
        $region45: #{self_attention_forward.1} parent=27 // pred_check
          %p467 = pneg %p160
        $region46: #{self_attention_forward.1} parent=27 // pred_check_branch
          %469 = sbr.rel (%p467) target = $region48
        $region47: #{self_attention_forward.1} parent=27 // pred_region
          %p470 = scmp.lt.s32.totalorder %s32, 3
          %s471 = scalar_select %p470, %s32, 3
          %s472 = smul.addr %s471, 4
          %s473 = scalar_lea.vmem %s4, %s472
        $region48: #{self_attention_forward.1} parent=27 // pred_fallthru
          _
        // Predicated region
        $region49: #{self_attention_forward.1} parent=27 // pred_check
          %p474 = pneg %p186
        $region50: #{self_attention_forward.1} parent=27 // pred_check_branch
          %476 = sbr.rel (%p474) target = $region52
        $region51: #{self_attention_forward.1} parent=27 // pred_region
          %p477 = scmp.lt.s32.totalorder %s32, 3
          %s478 = scalar_select %p477, %s32, 3
          %s479 = smul.addr %s478, 4
          %s480 = scalar_lea.vmem %s5, %s479
        $region52: #{self_attention_forward.1} parent=27 // pred_fallthru
          _
        // Predicated region
        $region53: #{self_attention_forward.1} parent=27 // pred_check
          %p481 = pneg %p212
        $region54: #{self_attention_forward.1} parent=27 // pred_check_branch
          %483 = sbr.rel (%p481) target = $region56
        $region55: #{self_attention_forward.1} parent=27 // pred_region
          %p484 = scmp.lt.s32.totalorder %s32, 3
          %s485 = scalar_select %p484, %s32, 3
          %s486 = scalar_lea.vmem %s6, %s485
        $region56: #{self_attention_forward.1} parent=27 // pred_fallthru
          _
        // Predicated region
        $region57: #{self_attention_forward.1} parent=27 // pred_check
          %p487 = pneg %p238
        $region58: #{self_attention_forward.1} parent=27 // pred_check_branch
          %489 = sbr.rel (%p487) target = $region60
        $region59: #{self_attention_forward.1} parent=27 // pred_region
          %p490 = scmp.lt.s32.totalorder %s32, 3
          %s491 = scalar_select %p490, %s32, 3
          %s492 = scalar_lea.vmem %s7, %s491
        $region60: #{self_attention_forward.1} parent=27 // pred_fallthru
          _
        // Predicated region
        $region61: #{self_attention_forward.1} parent=27 // pred_check
          %p493 = pneg %p264
        $region62: #{self_attention_forward.1} parent=27 // pred_check_branch
          %495 = sbr.rel (%p493) target = $region64
        $region63: #{self_attention_forward.1} parent=27 // pred_region
          %p496 = scmp.lt.s32.totalorder %s32, 3
          %s497 = scalar_select %p496, %s32, 3
          %s498 = scalar_lea.vmem %s8, %s497
        $region64: #{self_attention_forward.1} parent=27 // pred_fallthru
          _
        // Predicated region
        $region65: #{self_attention_forward.1} parent=27 // pred_check
          %p499 = pneg %p290
        $region66: #{self_attention_forward.1} parent=27 // pred_check_branch
          %501 = sbr.rel (%p499) target = $region68
        $region67: #{self_attention_forward.1} parent=27 // pred_region
          %p502 = scmp.lt.s32.totalorder %s32, 3
          %s503 = scalar_select %p502, %s32, 3
          %s504 = smul.addr %s503, 4
          %s505 = smul.addr %s504, 4
          %s506 = scalar_lea.vmem %s9, %s505
        $region68: #{self_attention_forward.1} parent=27 // pred_fallthru
          _
      $region28: #{self_attention_forward.1} parent=5 // pred_fallthru
        _
      %p507 = scmp.le.s32.totalorder 1, %s24
      %p508 = scmp.lt.s32.totalorder %s24, 9
      %p509 = pnand %p507, %p508
      %p510 = pneg %p509
      // Predicated region
      $region69: #{self_attention_forward.1} parent=5 // pred_check
        _
      $region70: #{self_attention_forward.1} parent=5 // pred_check_branch
        %512 = sbr.rel (%p509) target = $region72
      $region71: #{self_attention_forward.1} parent=5 // pred_region
        %s513 = ssub.s32 %s24, 1
        %p514 = scmp.lt.s32.totalorder %s33, 1
        %s515 = scalar_select %p514, %s33, 1
        %s516 = smul.addr %s515, 8
        %s517 = scalar_lea.vmem %s0, %s516
        %p518 = pneg %p62
        %p519 = pneg %p59
        %p520 = scmp.lt.s32.totalorder %s33, 1
        %s521 = scalar_select %p520, %s33, 1
        %s522 = smul.addr %s521, 8
        %s523 = scalar_lea.vmem %s1, %s522
        %p524 = pneg %p88
        %p525 = pneg %p85
        %p526 = scmp.lt.s32.totalorder %s33, 1
        %s527 = scalar_select %p526, %s33, 1
        %s528 = smul.addr %s527, 8
        %s529 = scalar_lea.vmem %s2, %s528
        %p530 = pneg %p114
        %p531 = pneg %p111
        %p532 = scmp.lt.s32.totalorder %s34, 3
        %s533 = scalar_select %p532, %s34, 3
        %s534 = smul.addr %s533, 4
        %s535 = scalar_lea.vmem %s3, %s534
        %p536 = pneg %p140
        %p537 = pneg %p137
        %p538 = scmp.lt.s32.totalorder %s34, 3
        %s539 = scalar_select %p538, %s34, 3
        %s540 = smul.addr %s539, 4
        %s541 = scalar_lea.vmem %s4, %s540
        %p542 = pneg %p166
        %p543 = pneg %p163
        %p544 = scmp.lt.s32.totalorder %s34, 3
        %s545 = scalar_select %p544, %s34, 3
        %s546 = smul.addr %s545, 4
        %s547 = scalar_lea.vmem %s5, %s546
        %p548 = pneg %p192
        %p549 = pneg %p189
        %p550 = scmp.lt.s32.totalorder %s34, 3
        %s551 = scalar_select %p550, %s34, 3
        %s552 = scalar_lea.vmem %s6, %s551
        %p553 = pneg %p218
        %p554 = pneg %p215
        %p555 = scmp.lt.s32.totalorder %s34, 3
        %s556 = scalar_select %p555, %s34, 3
        %s557 = scalar_lea.vmem %s7, %s556
        %p558 = pneg %p244
        %p559 = pneg %p241
        %p560 = scmp.lt.s32.totalorder %s34, 3
        %s561 = scalar_select %p560, %s34, 3
        %s562 = scalar_lea.vmem %s8, %s561
        %p563 = pneg %p270
        %p564 = pneg %p267
        %p565 = scmp.lt.s32.totalorder %s34, 3
        %s566 = scalar_select %p565, %s34, 3
        %s567 = smul.addr %s566, 4
        %s568 = smul.addr %s567, 4
        %s569 = scalar_lea.vmem %s9, %s568
        %p570 = pneg %p296
        %p571 = pneg %p293
        %p572 = pneg %p317
        %p573 = pneg %p314
        %p574 = pneg %p338
        %p575 = pneg %p335
        %p576 = pneg %p359
        %p577 = pneg %p356
        %p578 = pneg %p385
        %p579 = pneg %p382
        %p580 = scmp.lt.s32.totalorder %s33, 1
        %s581 = scalar_select %p580, %s33, 1
        %s582 = smul.addr %s581, 8
        %s583 = scalar_lea.vmem %s13, %s582
        %p584 = pneg %p411
        %p585 = pneg %p408
        %s586 = sand.u32 %s398, 1
        %s587 = scalar_lea.sflag [#allocation5], %s586
        %s588 = sand.u32 %s398, 1
        %s589 = smul.addr %s588, 8
        %s590 = scalar_lea.vmem [#allocation4], %s589
        %p591 = scmp.lt.s32.totalorder %s33, 1
        %s592 = scalar_select %p591, %s33, 1
        %s593 = smul.addr %s592, 8
        %s594 = scalar_lea.vmem %s0, %s593
        %p595 = scmp.lt.s32.totalorder %s33, 1
        %s596 = scalar_select %p595, %s33, 1
        %s597 = smul.addr %s596, 8
        %s598 = scalar_lea.vmem %s1, %s597
        %p599 = scmp.lt.s32.totalorder %s33, 1
        %s600 = scalar_select %p599, %s33, 1
        %s601 = smul.addr %s600, 8
        %s602 = scalar_lea.vmem %s2, %s601
        %p603 = scmp.lt.s32.totalorder %s34, 3
        %s604 = scalar_select %p603, %s34, 3
        %s605 = smul.addr %s604, 4
        %s606 = scalar_lea.vmem %s3, %s605
        %p607 = scmp.lt.s32.totalorder %s34, 3
        %s608 = scalar_select %p607, %s34, 3
        %s609 = smul.addr %s608, 4
        %s610 = scalar_lea.vmem %s4, %s609
        %p611 = scmp.lt.s32.totalorder %s34, 3
        %s612 = scalar_select %p611, %s34, 3
        %s613 = smul.addr %s612, 4
        %s614 = scalar_lea.vmem %s5, %s613
        %p615 = scmp.lt.s32.totalorder %s34, 3
        %s616 = scalar_select %p615, %s34, 3
        %s617 = scalar_lea.vmem %s6, %s616
        %p618 = scmp.lt.s32.totalorder %s34, 3
        %s619 = scalar_select %p618, %s34, 3
        %s620 = scalar_lea.vmem %s7, %s619
        %p621 = scmp.lt.s32.totalorder %s34, 3
        %s622 = scalar_select %p621, %s34, 3
        %s623 = scalar_lea.vmem %s8, %s622
        %p624 = scmp.lt.s32.totalorder %s34, 3
        %s625 = scalar_select %p624, %s34, 3
        %s626 = smul.addr %s625, 4
        %s627 = smul.addr %s626, 4
        %s628 = scalar_lea.vmem %s9, %s627
        %p629 = scmp.lt.s32.totalorder %s33, 1
        %s630 = scalar_select %p629, %s33, 1
        %s631 = smul.addr %s630, 8
        %s632 = scalar_lea.vmem %s13, %s631
        %p634 = scmp.eq.s32.totalorder %s34, 0
        // Predicated region
        $region73: #{self_attention_forward.1} parent=71 // pred_check
          %p635 = pneg %p634
        $region74: #{self_attention_forward.1} parent=71 // pred_check_branch
          %637 = sbr.rel (%p635) target = $region76
        $region75: #{self_attention_forward.1} parent=71 // pred_region
          %vm638 = vcmask 261120
          %639 = vst.msk [vmem:[#allocation2] sm:$0xff] %vm638, 0.0
          %vm640 = vcmask 64512
          %641 = vst.msk [vmem:[#allocation3] sm:$0xff] %vm640, 0.0
        $region76: #{self_attention_forward.1} parent=71 // pred_fallthru
          _
        %v642 = vld [vmem:[%s594] sm:$0xff]
        %v643 = vpack.c.bf16 %v642, %v642
        %v644 = vld [vmem:[%s598] sm:$0xff]
        %v645 = vpack.c.bf16 %v644, %v644
        %v646 = vld [vmem:[%s602] sm:$0xff]
        %v647 = vpack.c.bf16 %v646, %v646
        %v648 = vld [vmem:[%s606] sm:$0xf]
        %v649 = vld [vmem:[%s617] sm:$0x1]
        %v651 = vlaneseq
        %v652 = vshrl.u32 %v651, 7
        %v653 = vsub.s32 0, %v652
        %v654 = vrot.slane %v649, %v653
        %vm656 = vcmask 261120
        %v658 = vsel %vm656, %v643, 0
        %v661 = vsel %vm656, %v648, 0
        %663 = vmatprep.subr.bf16.mxu0 0
        %664 = vmatpush1.bf16.xpose.msra.mxu0 0
        %665 = vmatprep.subr.bf16.mxu0 0
        %666 = vmatpush1.bf16.xpose.msra.mxu0 0
        %667 = vmatprep.subr.bf16.mxu0 0
        %668 = vmatpush1.bf16.xpose.msra.mxu0 0
        %669 = vmatprep.subr.bf16.mxu0 0
        %670 = vmatpush1.bf16.xpose.msra.mxu0 0
        %671 = vmatprep.subr.bf16.mxu0 0
        %672 = vmatpush1.bf16.xpose.msra.mxu0 0
        %673 = vmatprep.subr.bf16.mxu0 0
        %674 = vmatpush1.bf16.xpose.msra.mxu0 0
        %675 = vmatprep.subr.bf16.mxu0 0
        %676 = vmatpush1.bf16.xpose.msra.mxu0 0
        %677 = vmatprep.subr.bf16.mxu0 0
        %678 = vmatpush1.bf16.xpose.msra.mxu0 %v661
        %679 = vmatprep.subr.bf16.mxu0 0
        %680 = vmatpush2.bf16.xpose.msra.mxu0 0
        %681 = vmatprep.subr.bf16.mxu0 0
        %682 = vmatpush2.bf16.xpose.msra.mxu0 0
        %683 = vmatprep.subr.bf16.mxu0 0
        %684 = vmatpush2.bf16.xpose.msra.mxu0 0
        %685 = vmatprep.subr.bf16.mxu0 0
        %686 = vmatpush2.bf16.xpose.msra.mxu0 0
        %687 = vmatprep.subr.bf16.mxu0 0
        %688 = vmatpush2.bf16.xpose.msra.mxu0 0
        %689 = vmatprep.subr.bf16.mxu0 0
        %690 = vmatpush2.bf16.xpose.msra.mxu0 0
        %691 = vmatprep.subr.bf16.mxu0 0
        %692 = vmatpush2.bf16.xpose.msra.mxu0 0
        %693 = vmatprep.subr.bf16.mxu0 0
        %694 = vmatpush2.bf16.xpose.msra.mxu0 0
        %695 = vmatprep.mubr.bf16.mxu0 0
        %696 = vmatmul.mubr.bf16.gmra.mxu0 %v658
        %v697 = vpop.f32.mrf.mxu0
        %v698 = vadd.f32 %v654, %v697
        %v699 = vpop.f32.mrf.mxu0
        %v700 = vpop.f32.mrf.mxu0
        %v701 = vpop.f32.mrf.mxu0
        %702 = vdwg.mxu0
        %v703 = vmul.f32 %v698, 0.35355338
        %v704 = vld [vmem:[%s610] sm:$0xf]
        %v705 = vld [vmem:[%s620] sm:$0x1]
        %v707 = vlaneseq
        %v708 = vshrl.u32 %v707, 7
        %v709 = vsub.s32 0, %v708
        %v710 = vrot.slane %v705, %v709
        %v713 = vsel %vm656, %v645, 0
        %v716 = vsel %vm656, %v704, 0
        %718 = vmatprep.subr.bf16.mxu0 0
        %719 = vmatpush1.bf16.xpose.msra.mxu0 0
        %720 = vmatprep.subr.bf16.mxu0 0
        %721 = vmatpush1.bf16.xpose.msra.mxu0 0
        %722 = vmatprep.subr.bf16.mxu0 0
        %723 = vmatpush1.bf16.xpose.msra.mxu0 0
        %724 = vmatprep.subr.bf16.mxu0 0
        %725 = vmatpush1.bf16.xpose.msra.mxu0 0
        %726 = vmatprep.subr.bf16.mxu0 0
        %727 = vmatpush1.bf16.xpose.msra.mxu0 0
        %728 = vmatprep.subr.bf16.mxu0 0
        %729 = vmatpush1.bf16.xpose.msra.mxu0 0
        %730 = vmatprep.subr.bf16.mxu0 0
        %731 = vmatpush1.bf16.xpose.msra.mxu0 0
        %732 = vmatprep.subr.bf16.mxu0 0
        %733 = vmatpush1.bf16.xpose.msra.mxu0 %v716
        %734 = vmatprep.subr.bf16.mxu0 0
        %735 = vmatpush2.bf16.xpose.msra.mxu0 0
        %736 = vmatprep.subr.bf16.mxu0 0
        %737 = vmatpush2.bf16.xpose.msra.mxu0 0
        %738 = vmatprep.subr.bf16.mxu0 0
        %739 = vmatpush2.bf16.xpose.msra.mxu0 0
        %740 = vmatprep.subr.bf16.mxu0 0
        %741 = vmatpush2.bf16.xpose.msra.mxu0 0
        %742 = vmatprep.subr.bf16.mxu0 0
        %743 = vmatpush2.bf16.xpose.msra.mxu0 0
        %744 = vmatprep.subr.bf16.mxu0 0
        %745 = vmatpush2.bf16.xpose.msra.mxu0 0
        %746 = vmatprep.subr.bf16.mxu0 0
        %747 = vmatpush2.bf16.xpose.msra.mxu0 0
        %748 = vmatprep.subr.bf16.mxu0 0
        %749 = vmatpush2.bf16.xpose.msra.mxu0 0
        %750 = vmatprep.mubr.bf16.mxu0 0
        %751 = vmatmul.mubr.bf16.gmra.mxu0 %v713
        %v752 = vpop.f32.mrf.mxu0
        %v753 = vadd.f32 %v710, %v752
        %v754 = vpop.f32.mrf.mxu0
        %v755 = vpop.f32.mrf.mxu0
        %v756 = vpop.f32.mrf.mxu0
        %757 = vdwg.mxu0
        %v758 = vld [vmem:[%s614] sm:$0xf]
        %v759 = vld [vmem:[%s623] sm:$0x1]
        %v761 = vlaneseq
        %v762 = vshrl.u32 %v761, 7
        %v763 = vsub.s32 0, %v762
        %v764 = vrot.slane %v759, %v763
        %v767 = vsel %vm656, %v647, 0
        %v770 = vsel %vm656, %v758, 0
        %772 = vmatprep.subr.bf16.mxu0 0
        %773 = vmatpush1.bf16.xpose.msra.mxu0 0
        %774 = vmatprep.subr.bf16.mxu0 0
        %775 = vmatpush1.bf16.xpose.msra.mxu0 0
        %776 = vmatprep.subr.bf16.mxu0 0
        %777 = vmatpush1.bf16.xpose.msra.mxu0 0
        %778 = vmatprep.subr.bf16.mxu0 0
        %779 = vmatpush1.bf16.xpose.msra.mxu0 0
        %780 = vmatprep.subr.bf16.mxu0 0
        %781 = vmatpush1.bf16.xpose.msra.mxu0 0
        %782 = vmatprep.subr.bf16.mxu0 0
        %783 = vmatpush1.bf16.xpose.msra.mxu0 0
        %784 = vmatprep.subr.bf16.mxu0 0
        %785 = vmatpush1.bf16.xpose.msra.mxu0 0
        %786 = vmatprep.subr.bf16.mxu0 0
        %787 = vmatpush1.bf16.xpose.msra.mxu0 %v770
        %788 = vmatprep.subr.bf16.mxu0 0
        %789 = vmatpush2.bf16.xpose.msra.mxu0 0
        %790 = vmatprep.subr.bf16.mxu0 0
        %791 = vmatpush2.bf16.xpose.msra.mxu0 0
        %792 = vmatprep.subr.bf16.mxu0 0
        %793 = vmatpush2.bf16.xpose.msra.mxu0 0
        %794 = vmatprep.subr.bf16.mxu0 0
        %795 = vmatpush2.bf16.xpose.msra.mxu0 0
        %796 = vmatprep.subr.bf16.mxu0 0
        %797 = vmatpush2.bf16.xpose.msra.mxu0 0
        %798 = vmatprep.subr.bf16.mxu0 0
        %799 = vmatpush2.bf16.xpose.msra.mxu0 0
        %800 = vmatprep.subr.bf16.mxu0 0
        %801 = vmatpush2.bf16.xpose.msra.mxu0 0
        %802 = vmatprep.subr.bf16.mxu0 0
        %803 = vmatpush2.bf16.xpose.msra.mxu0 0
        %804 = vmatprep.mubr.bf16.mxu0 0
        %805 = vmatmul.mubr.bf16.gmra.mxu0 %v767
        %v806 = vpop.f32.mrf.mxu0
        %v807 = vadd.f32 %v764, %v806
        %v808 = vpop.f32.mrf.mxu0
        %v809 = vpop.f32.mrf.mxu0
        %v810 = vpop.f32.mrf.mxu0
        %811 = vdwg.mxu0
        %v812 = vpack.c.bf16 %v703, %v703
        %v813 = vpack.c.bf16 %v753, %v753
        %vm814 = vcmask 64512
        %v816 = vsel %vm814, %v812, 0
        %v819 = vsel %vm814, %v813, 0
        %821 = vmatprep.subr.bf16.mxu0 0
        %822 = vmatpush1.bf16.xpose.msra.mxu0 0
        %823 = vmatprep.subr.bf16.mxu0 0
        %824 = vmatpush1.bf16.xpose.msra.mxu0 0
        %825 = vmatprep.subr.bf16.mxu0 0
        %826 = vmatpush1.bf16.xpose.msra.mxu0 0
        %827 = vmatprep.subr.bf16.mxu0 0
        %828 = vmatpush1.bf16.xpose.msra.mxu0 0
        %829 = vmatprep.subr.bf16.mxu0 0
        %830 = vmatpush1.bf16.xpose.msra.mxu0 0
        %831 = vmatprep.subr.bf16.mxu0 0
        %832 = vmatpush1.bf16.xpose.msra.mxu0 0
        %833 = vmatprep.subr.bf16.mxu0 0
        %834 = vmatpush1.bf16.xpose.msra.mxu0 0
        %835 = vmatprep.subr.bf16.mxu0 0
        %836 = vmatpush1.bf16.xpose.msra.mxu0 %v819
        %837 = vmatprep.subr.bf16.mxu0 0
        %838 = vmatpush2.bf16.xpose.msra.mxu0 0
        %839 = vmatprep.subr.bf16.mxu0 0
        %840 = vmatpush2.bf16.xpose.msra.mxu0 0
        %841 = vmatprep.subr.bf16.mxu0 0
        %842 = vmatpush2.bf16.xpose.msra.mxu0 0
        %843 = vmatprep.subr.bf16.mxu0 0
        %844 = vmatpush2.bf16.xpose.msra.mxu0 0
        %845 = vmatprep.subr.bf16.mxu0 0
        %846 = vmatpush2.bf16.xpose.msra.mxu0 0
        %847 = vmatprep.subr.bf16.mxu0 0
        %848 = vmatpush2.bf16.xpose.msra.mxu0 0
        %849 = vmatprep.subr.bf16.mxu0 0
        %850 = vmatpush2.bf16.xpose.msra.mxu0 0
        %851 = vmatprep.subr.bf16.mxu0 0
        %852 = vmatpush2.bf16.xpose.msra.mxu0 0
        %853 = vmatprep.mubr.bf16.mxu0 0
        %854 = vmatmul.mubr.bf16.gmra.mxu0 %v816
        %v855 = vpop.f32.mrf.mxu0
        %v856 = vadd.f32 0.0, %v855
        %v857 = vpop.f32.mrf.mxu0
        %v858 = vpop.f32.mrf.mxu0
        %v859 = vpop.f32.mrf.mxu0
        %860 = vdwg.mxu0
        %v861 = vsel %vm814, %v856, -inf
        %862 = vmax.xlane.f32.xlu0 %v861
        %v863 = vpop.xlane.xlu0 %862
        %v864 = vsub.f32 %v856, %v863
        %v865 = vmul.f32 %v864, 1.442695
        %v866 = vpow.pop %v865
        %v867 = vsel %vm814, %v866, 0.0
        %868 = vadd.xlane.f32.xlu0 %v867
        %v869 = vpop.xlane.xlu0 %868
        %v870 = vrcp.pop %v869
        %v871 = vmul.f32 %v866, %v870
        %v872 = vld [vmem:[#allocation3] sm:$0xff]
        %v873 = vadd.f32 %v872, %v871
        %874 = vst.msk [vmem:[#allocation3] sm:$0xff] %vm814, %v873
        %v875 = vpack.c.bf16 %v871, %v871
        %v876 = vpack.c.bf16 %v807, %v807
        %v878 = vsel %vm814, %v875, 0
        %vm880 = vcmask 1043456
        %v882 = vsel %vm880, %v876, 0
        %884 = vmatprep.subr.bf16.mxu0 0
        %885 = vmatpush1.bf16.msra.mxu0 0
        %886 = vmatprep.subr.bf16.mxu0 0
        %887 = vmatpush1.bf16.msra.mxu0 0
        %888 = vmatprep.subr.bf16.mxu0 0
        %889 = vmatpush1.bf16.msra.mxu0 0
        %890 = vmatprep.subr.bf16.mxu0 0
        %891 = vmatpush1.bf16.msra.mxu0 0
        %892 = vmatprep.subr.bf16.mxu0 0
        %893 = vmatpush1.bf16.msra.mxu0 0
        %894 = vmatprep.subr.bf16.mxu0 0
        %895 = vmatpush1.bf16.msra.mxu0 0
        %896 = vmatprep.subr.bf16.mxu0 0
        %897 = vmatpush1.bf16.msra.mxu0 0
        %898 = vmatprep.subr.bf16.mxu0 0
        %899 = vmatpush1.bf16.msra.mxu0 %v882
        %900 = vmatprep.subr.bf16.mxu0 0
        %901 = vmatpush2.bf16.msra.mxu0 0
        %902 = vmatprep.subr.bf16.mxu0 0
        %903 = vmatpush2.bf16.msra.mxu0 0
        %904 = vmatprep.subr.bf16.mxu0 0
        %905 = vmatpush2.bf16.msra.mxu0 0
        %906 = vmatprep.subr.bf16.mxu0 0
        %907 = vmatpush2.bf16.msra.mxu0 0
        %908 = vmatprep.subr.bf16.mxu0 0
        %909 = vmatpush2.bf16.msra.mxu0 0
        %910 = vmatprep.subr.bf16.mxu0 0
        %911 = vmatpush2.bf16.msra.mxu0 0
        %912 = vmatprep.subr.bf16.mxu0 0
        %913 = vmatpush2.bf16.msra.mxu0 0
        %914 = vmatprep.subr.bf16.mxu0 0
        %915 = vmatpush2.bf16.msra.mxu0 0
        %916 = vmatprep.mubr.bf16.mxu0 0
        %917 = vmatmul.mubr.bf16.gmra.mxu0 %v878
        %v918 = vpop.f32.mrf.mxu0
        %v919 = vadd.f32 0.0, %v918
        %v920 = vpop.f32.mrf.mxu0
        %v921 = vpop.f32.mrf.mxu0
        %v922 = vpop.f32.mrf.mxu0
        %923 = vdwg.mxu0
        %v924 = vld [vmem:[#allocation2] sm:$0xff]
        %v925 = vpack.c.bf16 %v919, %v919
        %v926 = vld [vmem:[%s628] sm:$0xf]
        %v927 = vld [vmem:[%s628 + $0x4] sm:$0xf]
        %v928 = vld [vmem:[%s628 + $0x8] sm:$0xf]
        %v929 = vld [vmem:[%s628 + $0xc] sm:$0xf]
        %v934 = vunpack.c.l.b16 %v926
        %v935 = vunpack.c.l.b16 %v927
        %v936 = vunpack.c.l.b16 %v928
        %v937 = vunpack.c.l.b16 %v929
        %v938 = vpack.c.b16 %v935, %v934
        %v939 = vpack.c.b16 %v937, %v936
        %v941 = vsel %vm814, %v925, 0
        %v944 = vsel %vm814, %v938, 0
        %v947 = vsel %vm814, %v939, 0
        %949 = vmatprep.subr.bf16.mxu0 0
        %950 = vmatpush1.bf16.xpose.msra.mxu0 0
        %951 = vmatprep.subr.bf16.mxu0 0
        %952 = vmatpush1.bf16.xpose.msra.mxu0 0
        %953 = vmatprep.subr.bf16.mxu0 0
        %954 = vmatpush1.bf16.xpose.msra.mxu0 0
        %955 = vmatprep.subr.bf16.mxu0 0
        %956 = vmatpush1.bf16.xpose.msra.mxu0 0
        %957 = vmatprep.subr.bf16.mxu0 0
        %958 = vmatpush1.bf16.xpose.msra.mxu0 0
        %959 = vmatprep.subr.bf16.mxu0 0
        %960 = vmatpush1.bf16.xpose.msra.mxu0 0
        %961 = vmatprep.subr.bf16.mxu0 0
        %962 = vmatpush1.bf16.xpose.msra.mxu0 %v947
        %963 = vmatprep.subr.bf16.mxu0 0
        %964 = vmatpush1.bf16.xpose.msra.mxu0 %v944
        %965 = vmatprep.subr.bf16.mxu0 0
        %966 = vmatpush2.bf16.xpose.msra.mxu0 0
        %967 = vmatprep.subr.bf16.mxu0 0
        %968 = vmatpush2.bf16.xpose.msra.mxu0 0
        %969 = vmatprep.subr.bf16.mxu0 0
        %970 = vmatpush2.bf16.xpose.msra.mxu0 0
        %971 = vmatprep.subr.bf16.mxu0 0
        %972 = vmatpush2.bf16.xpose.msra.mxu0 0
        %973 = vmatprep.subr.bf16.mxu0 0
        %974 = vmatpush2.bf16.xpose.msra.mxu0 0
        %975 = vmatprep.subr.bf16.mxu0 0
        %976 = vmatpush2.bf16.xpose.msra.mxu0 0
        %977 = vmatprep.subr.bf16.mxu0 0
        %978 = vmatpush2.bf16.xpose.msra.mxu0 0
        %979 = vmatprep.subr.bf16.mxu0 0
        %980 = vmatpush2.bf16.xpose.msra.mxu0 0
        %981 = vmatprep.mubr.bf16.mxu0 0
        %982 = vmatmul.mubr.bf16.gmra.mxu0 %v941
        %v983 = vpop.f32.mrf.mxu0
        %v984 = vadd.f32 0.0, %v983
        %v985 = vpop.f32.mrf.mxu0
        %v986 = vpop.f32.mrf.mxu0
        %v987 = vpop.f32.mrf.mxu0
        %988 = vdwg.mxu0
        %v989 = vadd.f32 %v924, %v984
        %990 = vst.msk [vmem:[#allocation2] sm:$0xff] %vm656, %v989
        %p991 = scmp.eq.s32.totalorder %s34, 3
        // Predicated region
        $region77: #{self_attention_forward.1} parent=71 // pred_check
          %p992 = pneg %p991
        $region78: #{self_attention_forward.1} parent=71 // pred_check_branch
          %994 = sbr.rel (%p992) target = $region80
        $region79: #{self_attention_forward.1} parent=71 // pred_region
          %v995 = vld [vmem:[#allocation2] sm:$0xff]
          %v996 = vld [vmem:[%s10] sm:$0x1]
          %v998 = vlaneseq
          %v999 = vshrl.u32 %v998, 7
          %v1000 = vsub.s32 0, %v999
          %v1001 = vrot.slane %v996, %v1000
          %v1003 = vadd.f32 %v995, %v1001
          %v1004 = vadd.f32 %v1003, %v642
          %v1005 = vsel %vm656, %v1004, 0.0
          %1006 = vadd.xlane.f32.xlu0 %v1005
          %v1007 = vpop.xlane.xlu0 %1006
          %v1008 = vrcp.pop 32.0
          %v1009 = vmul.f32 %v1007, %v1008
          %v1010 = vsub.f32 %v1004, %v1009
          %v1011 = vmul.f32 %v1010, %v1010
          %v1012 = vsel %vm656, %v1011, 0.0
          %1013 = vadd.xlane.f32.xlu0 %v1012
          %v1014 = vpop.xlane.xlu0 %1013
          %v1015 = vmul.f32 %v1014, %v1008
          %v1016 = vadd.f32 %v1015, 1e-05
          %v1017 = vrsqrt.pop %v1016
          %v1018 = vmul.f32 %v1010, %v1017
          %v1019 = vld [vmem:[%s11] sm:$0x1]
          %v1021 = vlaneseq
          %v1022 = vshrl.u32 %v1021, 7
          %v1023 = vsub.s32 0, %v1022
          %v1024 = vrot.slane %v1019, %v1023
          %v1026 = vmul.f32 %v1018, %v1024
          %v1027 = vld [vmem:[%s12] sm:$0x1]
          %v1029 = vlaneseq
          %v1030 = vshrl.u32 %v1029, 7
          %v1031 = vsub.s32 0, %v1030
          %v1032 = vrot.slane %v1027, %v1031
          %v1034 = vadd.f32 %v1026, %v1032
          %1035 = vst.msk [vmem:[%s632] sm:$0xff] %vm656, %v1034
          %v1036 = vld [vmem:[#allocation3] sm:$0xff]
          %v1037 = vmul.f32 %v1036, 0.25
          %1038 = vst.msk [vmem:[%s590] sm:$0xff] %vm814, %v1037
        $region80: #{self_attention_forward.1} parent=71 // pred_fallthru
          _
        %p1039 = scmp.lt.s32.totalorder %s33, 1
        %s1040 = scalar_select %p1039, %s33, 1
        %s1041 = smul.addr %s1040, 8
        %s1042 = scalar_lea.vmem %s13, %s1041
        %s1043 = sand.u32 %s398, 1
        %s1044 = scalar_lea.sflag [#allocation5], %s1043
        %s1045 = sand.u32 %s398, 1
        %s1046 = smul.addr %s1045, 8
        %s1047 = scalar_lea.vmem [#allocation4], %s1046
        // Predicated region
        $region81: #{self_attention_forward.1} parent=71 // pred_check
          %p1048 = pneg %p382
        $region82: #{self_attention_forward.1} parent=71 // pred_check_branch
          %1050 = sbr.rel (%p1048) target = $region84
        $region83: #{self_attention_forward.1} parent=71 // pred_region
          _
        $region84: #{self_attention_forward.1} parent=71 // pred_fallthru
          _
        // Predicated region
        $region85: #{self_attention_forward.1} parent=71 // pred_check
          %p1051 = pneg %p408
        $region86: #{self_attention_forward.1} parent=71 // pred_check_branch
          %1053 = sbr.rel (%p1051) target = $region88
        $region87: #{self_attention_forward.1} parent=71 // pred_region
          %s1055 = ssub.s32 128, 128
          %1056 = vsyncadd %s1044, %s1055
          %s1057 = smul.addr %s33, 128
          %s1058 = scalar_lea.hbm %s14, %s1057
          %s1060 = sshll.u32 %s1047, 4
          %s1061 = int_to_ptr.vmem [resolvable:$true] %s1060
          %1063 = dma.vmem_to_hbm [thread:$0]  %s1061, 128, %s1058, %s1044
        $region88: #{self_attention_forward.1} parent=71 // pred_fallthru
          _
      $region72: #{self_attention_forward.1} parent=5 // pred_fallthru
        _
      %p1064 = scmp.le.s32.totalorder 2, %s24
      // Predicated region
      $region89: #{self_attention_forward.1} parent=5 // pred_check
        %p1065 = pneg %p1064
      $region90: #{self_attention_forward.1} parent=5 // pred_check_branch
        %1067 = sbr.rel (%p1065) target = $region92
      $region91: #{self_attention_forward.1} parent=5 // pred_region
        %s1068 = ssub.s32 %s24, 2
        // Predicated region
        $region93: #{self_attention_forward.1} parent=91 // pred_check
          %p1069 = pneg %p388
        $region94: #{self_attention_forward.1} parent=91 // pred_check_branch
          %1071 = sbr.rel (%p1069) target = $region96
        $region95: #{self_attention_forward.1} parent=91 // pred_region
          %p1072 = scmp.lt.s32.totalorder %s35, 1
          %s1073 = scalar_select %p1072, %s35, 1
          %s1074 = smul.addr %s1073, 8
          %s1075 = scalar_lea.vmem %s13, %s1074
        $region96: #{self_attention_forward.1} parent=91 // pred_fallthru
          _
        // Predicated region
        $region97: #{self_attention_forward.1} parent=91 // pred_check
          %p1076 = pneg %p414
        $region98: #{self_attention_forward.1} parent=91 // pred_check_branch
          %1078 = sbr.rel (%p1076) target = $region100
        $region99: #{self_attention_forward.1} parent=91 // pred_region
          %s1079 = sand.u32 %s399, 1
          %s1080 = scalar_lea.sflag [#allocation5], %s1079
          %s1081 = sand.u32 %s399, 1
          %s1082 = smul.addr %s1081, 8
          %s1083 = scalar_lea.vmem [#allocation4], %s1082
          %1084 = dma.done %s1080, 128
        $region100: #{self_attention_forward.1} parent=91 // pred_fallthru
          _
      $region92: #{self_attention_forward.1} parent=5 // pred_fallthru
        _
    $region6: #{self_attention_forward.1} parent=1 // loop_footer
      %s28 = sadd.s32 1, %s24
    $region7: #{self_attention_forward.1} parent=1 // loop_footer_branch
      %23 = sbr.rel target = $region3
    $region8: #{self_attention_forward.1} parent=1 // loop_exit
      _
    %1085 = vsyncpa [#allocation5], 1
    %s1086 = scalar_lea.sflag [#allocation5], 1
    %1087 = vsyncpa %s1086, 1

</llo_original>
